<compile_context>
chip_gen: v6e
topology: v6e:2x2x1
jax: 0.10.0
libtpu: 0.0.40
codegen_flags: <defaults>
</compile_context>

<pallas_src>
import functools

import jax
import jax.numpy as jnp
from jax.experimental import pallas as pl
from jax.experimental.pallas import tpu as pltpu

LANE = 128
NEG_INF = -1e30


def _round_up(x, m=LANE):
    return ((x + m - 1) // m) * m


def _pick_row_tile(n):
    for t in (512, 256, 128, 64, 32, 16, 8):
        if n % t == 0:
            return t
    return n


# ----------------------------------------------------------------------------
# Kernel A: fused first_lin + conv linear projection + attention scores
#   h  = leaky_relu_{0.01}(x @ W0 + b0)
#   xw = h @ Wc                     (per-head features, lane-concatenated)
#   sd = xw @ A_sd                  (col h = src score of head h, col H+h = dst)
# ----------------------------------------------------------------------------
def _project_kernel(x_ref, w0_ref, b0_ref, wc_ref, asd_ref, xw_ref, sd_ref):
    x = x_ref[...].astype(jnp.bfloat16)
    h = jnp.dot(x, w0_ref[...], preferred_element_type=jnp.float32) + b0_ref[...]
    h = jnp.where(h > 0, h, 0.01 * h)                     # F.leaky_relu (f32 VPU)
    xw = jnp.dot(h.astype(jnp.bfloat16), wc_ref[...],
                 preferred_element_type=jnp.float32)
    xw_ref[...] = xw
    sd_ref[...] = jnp.dot(xw.astype(jnp.bfloat16), asd_ref[...],
                          preferred_element_type=jnp.float32)


def project(x, w0, b0, wc, asd):
    n, fp = x.shape
    dp = w0.shape[1]
    hcp = wc.shape[1]
    tm = _pick_row_tile(n)
    return pl.pallas_call(
        _project_kernel,
        out_shape=(jax.ShapeDtypeStruct((n, hcp), jnp.float32),
                   jax.ShapeDtypeStruct((n, hcp), jnp.float32)),
        grid=(n // tm,),
        in_specs=[
            pl.BlockSpec((tm, fp), lambda i: (i, 0)),
            pl.BlockSpec((fp, dp), lambda i: (0, 0)),
            pl.BlockSpec((1, dp), lambda i: (0, 0)),
            pl.BlockSpec((dp, hcp), lambda i: (0, 0)),
            pl.BlockSpec((hcp, hcp), lambda i: (0, 0)),
        ],
        out_specs=(pl.BlockSpec((tm, hcp), lambda i: (i, 0)),
                   pl.BlockSpec((tm, hcp), lambda i: (i, 0))),
        compiler_params=pltpu.CompilerParams(dimension_semantics=("parallel",)),
    )(x, w0, b0, wc, asd)


# ----------------------------------------------------------------------------
# Kernel B: layer-1 multi-head attention + bias + leaky_relu + BN1
#           + layer-2 linear projection + layer-2 attention scores  (fused)
# ----------------------------------------------------------------------------
def _gat_layer_mid_kernel(xw_ref, sd_ref, mask_ref, b_ref, g_ref, beta_ref,
                          wc2_ref, asd2_ref, xw2_ref, sd2_ref, *, heads, c):
    n = xw_ref.shape[0]
    hcp = xw_ref.shape[1]
    neg = mask_ref[...].astype(jnp.float32)           # additive mask: 0 / -1e30
    sd = sd_ref[...]
    outs = []
    for h in range(heads):                            # heads resident in one step
        s = sd[:, h:h + 1]                            # src scores  [N, 1]
        d = sd[:, heads + h:heads + h + 1]            # dst scores  [N, 1]
        logits = d + jnp.transpose(s, (1, 0))         # [N_dst, N_src]
        logits = jnp.where(logits > 0, logits, 0.2 * logits) + neg
        m = jnp.max(logits, axis=-1, keepdims=True)
        p = jnp.exp(logits - m)
        p = p * pl.reciprocal(jnp.sum(p, axis=-1, keepdims=True), approx=True)
        xw_h = xw_ref[:, h * c:(h + 1) * c]           # per-head lane slice
        outs.append(jnp.dot(p.astype(jnp.bfloat16), xw_h.astype(jnp.bfloat16),
                            preferred_element_type=jnp.float32))
    if hcp > heads * c:
        outs.append(jnp.zeros((n, hcp - heads * c), jnp.float32))
    att = jnp.concatenate(outs, axis=-1)              # lane-dense [N, HCP]
    # bias + leaky_relu(0.01) + BatchNorm1d (batch stats, one-pass var)
    y = att + b_ref[...]
    y = jnp.where(y > 0, y, 0.01 * y)
    mean = jnp.mean(y, axis=0, keepdims=True)
    var = jnp.mean(y * y, axis=0, keepdims=True) - mean * mean
    h1 = g_ref[...] * (y - mean) * jax.lax.rsqrt(var + 1e-5) + beta_ref[...]
    # layer-2 projection + scores fused into the epilogue
    xw2 = jnp.dot(h1.astype(jnp.bfloat16), wc2_ref[...],
                  preferred_element_type=jnp.float32)
    xw2_ref[...] = xw2
    sd2_ref[...] = jnp.dot(xw2.astype(jnp.bfloat16), asd2_ref[...],
                           preferred_element_type=jnp.float32)


def gat_layer_mid(xw, sd, mask_bias, bias, gamma, beta, wc2, asd2, *, heads, c):
    n = xw.shape[0]
    d2p = wc2.shape[1]
    kern = functools.partial(_gat_layer_mid_kernel, heads=heads, c=c)
    return pl.pallas_call(
        kern,
        out_shape=(jax.ShapeDtypeStruct((n, d2p), jnp.float32),
                   jax.ShapeDtypeStruct((n, d2p), jnp.float32)),
    )(xw, sd, mask_bias, bias, gamma, beta, wc2, asd2)


# ----------------------------------------------------------------------------
# Kernel C: layer-2 single-head attention + bias + leaky_relu + BN2
#           + lin2 + log_softmax  (fused tail; padded class lanes hold -1e30)
# ----------------------------------------------------------------------------
def _gat_layer_out_kernel(xw_ref, sd_ref, mask_ref, b_ref, g_ref, beta_ref,
                          wl_ref, bl_ref, o_ref):
    neg = mask_ref[...].astype(jnp.float32)
    sd = sd_ref[...]
    s = sd[:, 0:1]
    d = sd[:, 1:2]
    logits = d + jnp.transpose(s, (1, 0))
    logits = jnp.where(logits > 0, logits, 0.2 * logits) + neg
    m = jnp.max(logits, axis=-1, keepdims=True)
    p = jnp.exp(logits - m)
    p = p * pl.reciprocal(jnp.sum(p, axis=-1, keepdims=True), approx=True)
    att = jnp.dot(p.astype(jnp.bfloat16), xw_ref[...].astype(jnp.bfloat16),
                  preferred_element_type=jnp.float32)
    y = att + b_ref[...]
    y = jnp.where(y > 0, y, 0.01 * y)
    mean = jnp.mean(y, axis=0, keepdims=True)
    var = jnp.mean(y * y, axis=0, keepdims=True) - mean * mean
    h2 = g_ref[...] * (y - mean) * jax.lax.rsqrt(var + 1e-5) + beta_ref[...]
    # final classifier; padded class columns carry bias -1e30 -> exp underflows
    z = jnp.dot(h2.astype(jnp.bfloat16), wl_ref[...],
                preferred_element_type=jnp.float32) + bl_ref[...]
    mz = jnp.max(z, axis=-1, keepdims=True)
    zc = z - mz
    o_ref[...] = zc - jnp.log(jnp.sum(jnp.exp(zc), axis=-1, keepdims=True))


def gat_layer_out(xw, sd, mask_bias, bias, gamma, beta, wl, bl):
    n = xw.shape[0]
    cp = wl.shape[1]
    return pl.pallas_call(
        _gat_layer_out_kernel,
        out_shape=jax.ShapeDtypeStruct((n, cp), jnp.float32),
    )(xw, sd, mask_bias, bias, gamma, beta, wl, bl)


# ----------------------------------------------------------------------------
# Full GAT forward
# ----------------------------------------------------------------------------
def gat_forward(pp, x_p, mask_bias, *, heads, hidden, num_class):
    xw1, sd1 = project(x_p, pp["w_first"], pp["b_first"], pp["w_conv1"], pp["a_sd1"])
    xw2, sd2 = gat_layer_mid(xw1, sd1, mask_bias, pp["bias_conv1"],
                             pp["bn1_gamma"], pp["bn1_beta"],
                             pp["w_conv2"], pp["a_sd2"], heads=heads, c=hidden)
    out = gat_layer_out(xw2, sd2, mask_bias, pp["bias_conv2"],
                        pp["bn2_gamma"], pp["bn2_beta"],
                        pp["w_lin2"], pp["b_lin2"])
    return out[:, :num_class]


# ----------------------------------------------------------------------------
# Parameters: canonical (unpadded) params + lane-padded / bf16 packing
# ----------------------------------------------------------------------------
def make_params(key, features_num, hidden, heads, hidden2, num_class):
    ks = jax.random.split(key, 12)
    scale = 0.1
    return {
        "w_first": scale * jax.random.normal(ks[0], (features_num, hidden), jnp.float32),
        "b_first": scale * jax.random.normal(ks[1], (hidden,), jnp.float32),
        "w_conv1": scale * jax.random.normal(ks[2], (hidden, heads * hidden), jnp.float32),
        "att_src1": scale * jax.random.normal(ks[3], (heads, 1, hidden), jnp.float32),
        "att_dst1": scale * jax.random.normal(ks[4], (heads, 1, hidden), jnp.float32),
        "bias_conv1": scale * jax.random.normal(ks[5], (heads * hidden,), jnp.float32),
        "w_conv2": scale * jax.random.normal(ks[6], (hidden * heads, hidden2), jnp.float32),
        "att_src2": scale * jax.random.normal(ks[7], (1, 1, hidden2), jnp.float32),
        "att_dst2": scale * jax.random.normal(ks[8], (1, 1, hidden2), jnp.float32),
        "bias_conv2": scale * jax.random.normal(ks[9], (hidden2,), jnp.float32),
        "bn1_gamma": jnp.ones((heads * hidden,), jnp.float32),
        "bn1_beta": jnp.zeros((heads * hidden,), jnp.float32),
        "bn2_gamma": jnp.ones((hidden2,), jnp.float32),
        "bn2_beta": jnp.zeros((hidden2,), jnp.float32),
        "w_lin2": scale * jax.random.normal(ks[10], (hidden2, num_class), jnp.float32),
        "b_lin2": scale * jax.random.normal(ks[11], (num_class,), jnp.float32),
    }


def pad_params(p, features_num, hidden, heads, hidden2, num_class):
    fp = _round_up(features_num)
    dp = _round_up(hidden)
    hcp = _round_up(heads * hidden)
    d2p = _round_up(hidden2)
    cp = _round_up(num_class)

    def pad2(a, r, c_):
        return jnp.zeros((r, c_), jnp.float32).at[:a.shape[0], :a.shape[1]].set(a)

    def pad_row(a, c_, fill=0.0):
        return jnp.full((1, c_), fill, jnp.float32).at[0, :a.shape[0]].set(a)

    # Block-diag score matrices: (xw @ A)[:, h] = xw_h . att_src_h,
    #                            (xw @ A)[:, H+h] = xw_h . att_dst_h
    a_sd1 = jnp.zeros((hcp, hcp), jnp.float32)
    for h in range(heads):
        a_sd1 = a_sd1.at[h * hidden:(h + 1) * hidden, h].set(p["att_src1"][h, 0])
        a_sd1 = a_sd1.at[h * hidden:(h + 1) * hidden, heads + h].set(p["att_dst1"][h, 0])
    a_sd2 = jnp.zeros((d2p, d2p), jnp.float32)
    a_sd2 = a_sd2.at[:hidden2, 0].set(p["att_src2"][0, 0])
    a_sd2 = a_sd2.at[:hidden2, 1].set(p["att_dst2"][0, 0])

    bf = jnp.bfloat16
    padded = {
        "w_first": pad2(p["w_first"], fp, dp).astype(bf),
        "b_first": pad_row(p["b_first"], dp),
        "w_conv1": pad2(p["w_conv1"], dp, hcp).astype(bf),
        "a_sd1": a_sd1.astype(bf),
        "bias_conv1": pad_row(p["bias_conv1"], hcp),
        "bn1_gamma": pad_row(p["bn1_gamma"], hcp, fill=1.0),
        "bn1_beta": pad_row(p["bn1_beta"], hcp),
        "w_conv2": pad2(p["w_conv2"], hcp, d2p).astype(bf),
        "a_sd2": a_sd2.astype(bf),
        "bias_conv2": pad_row(p["bias_conv2"], d2p),
        "bn2_gamma": pad_row(p["bn2_gamma"], d2p, fill=1.0),
        "bn2_beta": pad_row(p["bn2_beta"], d2p),
        "w_lin2": pad2(p["w_lin2"], d2p, cp).astype(bf),
        # padded class lanes get -1e30 so log_softmax ignores them
        "b_lin2": pad_row(p["b_lin2"], cp, fill=NEG_INF),
    }
    return padded, (fp, dp, hcp, d2p, cp)


if __name__ == "__main__":
    # Small synthetic graph consistent with the module's forward.
    N = 64            # number of nodes
    FEATURES = 16     # args['features_num']
    HIDDEN = 32       # args['hidden']
    HEADS = 2         # args['heads']
    HIDDEN2 = 16      # args['hidden2']
    NUM_CLASS = 7     # args['num_class']
    E = 256           # number of edges

    key = jax.random.PRNGKey(0)
    k_x, k_src, k_dst, k_params = jax.random.split(key, 4)

    x = jax.random.normal(k_x, (N, FEATURES), jnp.float32)
    src = jax.random.randint(k_src, (E,), 0, N)
    dst = jax.random.randint(k_dst, (E,), 0, N)
    # edge_weight is unused by GATConv in this model.
    adj_mask = jnp.zeros((N, N), jnp.float32).at[dst, src].set(1.0)
    diag = jnp.arange(N)
    adj_mask = adj_mask.at[diag, diag].set(1.0)   # GATConv adds self-loops
    # Additive attention mask (0 for edges incl. self-loop, -1e30 otherwise),
    # stored bf16 to halve the HBM traffic of the largest tensor.
    mask_bias = jnp.where(adj_mask > 0, 0.0, NEG_INF).astype(jnp.bfloat16)

    params = make_params(k_params, FEATURES, HIDDEN, HEADS, HIDDEN2, NUM_CLASS)
    padded, dims = pad_params(params, FEATURES, HIDDEN, HEADS, HIDDEN2, NUM_CLASS)
    fp = dims[0]
    x_p = jnp.zeros((N, fp), jnp.float32).at[:, :FEATURES].set(x)

    fwd = jax.jit(functools.partial(gat_forward, heads=HEADS, hidden=HIDDEN,
                                    num_class=NUM_CLASS))
    out = fwd(padded, x_p, mask_bias)
    out = jax.block_until_ready(out)

    assert out.shape == (N, NUM_CLASS), out.shape
    # log_softmax rows should (approximately) exponentiate-sum to 1.
    assert jnp.allclose(jnp.sum(jnp.exp(out), axis=-1), 1.0, atol=1e-4)
    print("KERNEL_OK")
</pallas_src>

<mosaic_0001>
module attributes {stable_mosaic.version = 11 : i64} {
  func.func @_project_kernel(%arg0: i32, %arg1: memref<64x128xf32, #tpu.memory_space<vmem>>, %arg2: memref<128x128xbf16, #tpu.memory_space<vmem>>, %arg3: memref<1x128xf32, #tpu.memory_space<vmem>>, %arg4: memref<128x128xbf16, #tpu.memory_space<vmem>>, %arg5: memref<128x128xbf16, #tpu.memory_space<vmem>>, %arg6: memref<64x128xf32, #tpu.memory_space<vmem>>, %arg7: memref<64x128xf32, #tpu.memory_space<vmem>>) attributes {dimension_semantics = [#tpu.dimension_semantics<parallel>], iteration_bounds = array<i64: 1>, scalar_prefetch = 0 : i64, scratch_operands = 0 : i64, tpu.core_type = #tpu.core_type<tc>, window_params = [{transform_indices = @transform_0, window_bounds = array<i64: 64, 128>}, {pipeline_mode = #tpu.pipeline_mode<synchronous>, transform_indices = @transform_1, window_bounds = array<i64: 128, 128>}, {pipeline_mode = #tpu.pipeline_mode<synchronous>, transform_indices = @transform_2, window_bounds = array<i64: 1, 128>}, {pipeline_mode = #tpu.pipeline_mode<synchronous>, transform_indices = @transform_3, window_bounds = array<i64: 128, 128>}, {pipeline_mode = #tpu.pipeline_mode<synchronous>, transform_indices = @transform_4, window_bounds = array<i64: 128, 128>}, {transform_indices = @transform_5, window_bounds = array<i64: 64, 128>}, {transform_indices = @transform_6, window_bounds = array<i64: 64, 128>}]} {
    %c0 = arith.constant 0 : index
    %c0_0 = arith.constant 0 : index
    %0 = vector.load %arg1[%c0, %c0_0] : memref<64x128xf32, #tpu.memory_space<vmem>>, vector<64x128xf32>
    %1 = arith.truncf %0 : vector<64x128xf32> to vector<64x128xbf16>
    %c0_1 = arith.constant 0 : index
    %c0_2 = arith.constant 0 : index
    %2 = vector.load %arg2[%c0_1, %c0_2] : memref<128x128xbf16, #tpu.memory_space<vmem>>, vector<128x128xbf16>
    %cst = arith.constant dense<0.000000e+00> : vector<64x128xf32>
    %3 = tpu.matmul %1, %2, %cst {dimension_numbers = #tpu.dot_dimension_numbers<[1], [0], [0], [1], [0, 0, 1, 1], [], []>} : vector<64x128xbf16>, vector<128x128xbf16>, vector<64x128xf32> -> vector<64x128xf32>
    %c0_3 = arith.constant 0 : index
    %c0_4 = arith.constant 0 : index
    %4 = vector.load %arg3[%c0_3, %c0_4] : memref<1x128xf32, #tpu.memory_space<vmem>>, vector<1x128xf32>
    %5 = vector.broadcast %4 : vector<1x128xf32> to vector<64x128xf32>
    %6 = arith.addf %3, %5 : vector<64x128xf32>
    %cst_5 = arith.constant 0.000000e+00 : f32
    %7 = vector.broadcast %cst_5 : f32 to vector<64x128xf32>
    %8 = arith.cmpf ogt, %6, %7 : vector<64x128xf32>
    %cst_6 = arith.constant 0.00999999977 : f32
    %9 = vector.broadcast %cst_6 : f32 to vector<64x128xf32>
    %10 = arith.mulf %9, %6 : vector<64x128xf32>
    %11 = arith.select %8, %6, %10 : vector<64x128xi1>, vector<64x128xf32>
    %12 = arith.truncf %11 : vector<64x128xf32> to vector<64x128xbf16>
    %c0_7 = arith.constant 0 : index
    %c0_8 = arith.constant 0 : index
    %13 = vector.load %arg4[%c0_7, %c0_8] : memref<128x128xbf16, #tpu.memory_space<vmem>>, vector<128x128xbf16>
    %cst_9 = arith.constant dense<0.000000e+00> : vector<64x128xf32>
    %14 = tpu.matmul %12, %13, %cst_9 {dimension_numbers = #tpu.dot_dimension_numbers<[1], [0], [0], [1], [0, 0, 1, 1], [], []>} : vector<64x128xbf16>, vector<128x128xbf16>, vector<64x128xf32> -> vector<64x128xf32>
    %c0_10 = arith.constant 0 : index
    %c0_11 = arith.constant 0 : index
    %15 = vector.load %arg6[%c0_10, %c0_11] : memref<64x128xf32, #tpu.memory_space<vmem>>, vector<64x128xf32>
    tpu.vector_store %arg6[%c0_10, %c0_11], %14 {strides = array<i32>} : memref<64x128xf32, #tpu.memory_space<vmem>>, vector<64x128xf32>,
    %16 = arith.truncf %14 : vector<64x128xf32> to vector<64x128xbf16>
    %c0_12 = arith.constant 0 : index
    %c0_13 = arith.constant 0 : index
    %17 = vector.load %arg5[%c0_12, %c0_13] : memref<128x128xbf16, #tpu.memory_space<vmem>>, vector<128x128xbf16>
    %cst_14 = arith.constant dense<0.000000e+00> : vector<64x128xf32>
    %18 = tpu.matmul %16, %17, %cst_14 {dimension_numbers = #tpu.dot_dimension_numbers<[1], [0], [0], [1], [0, 0, 1, 1], [], []>} : vector<64x128xbf16>, vector<128x128xbf16>, vector<64x128xf32> -> vector<64x128xf32>
    %c0_15 = arith.constant 0 : index
    %c0_16 = arith.constant 0 : index
    %19 = vector.load %arg7[%c0_15, %c0_16] : memref<64x128xf32, #tpu.memory_space<vmem>>, vector<64x128xf32>
    tpu.vector_store %arg7[%c0_15, %c0_16], %18 {strides = array<i32>} : memref<64x128xf32, #tpu.memory_space<vmem>>, vector<64x128xf32>,
    return
  }
  func.func @transform_0(%arg0: i32) -> (i32, i32) {
    %c0_i32 = arith.constant 0 : i32
    %c0_i32_0 = arith.constant 0 : i32
    return %arg0, %c0_i32 : i32, i32
  }
  func.func @transform_1(%arg0: i32) -> (i32, i32) {
    %c0_i32 = arith.constant 0 : i32
    %c0_i32_0 = arith.constant 0 : i32
    %c0_i32_1 = arith.constant 0 : i32
    return %c0_i32, %c0_i32_0 : i32, i32
  }
  func.func @transform_2(%arg0: i32) -> (i32, i32) {
    %c0_i32 = arith.constant 0 : i32
    %c0_i32_0 = arith.constant 0 : i32
    %c0_i32_1 = arith.constant 0 : i32
    return %c0_i32, %c0_i32_0 : i32, i32
  }
  func.func @transform_3(%arg0: i32) -> (i32, i32) {
    %c0_i32 = arith.constant 0 : i32
    %c0_i32_0 = arith.constant 0 : i32
    %c0_i32_1 = arith.constant 0 : i32
    return %c0_i32, %c0_i32_0 : i32, i32
  }
  func.func @transform_4(%arg0: i32) -> (i32, i32) {
    %c0_i32 = arith.constant 0 : i32
    %c0_i32_0 = arith.constant 0 : i32
    %c0_i32_1 = arith.constant 0 : i32
    return %c0_i32, %c0_i32_0 : i32, i32
  }
  func.func @transform_5(%arg0: i32) -> (i32, i32) {
    %c0_i32 = arith.constant 0 : i32
    %c0_i32_0 = arith.constant 0 : i32
    return %arg0, %c0_i32 : i32, i32
  }
  func.func @transform_6(%arg0: i32) -> (i32, i32) {
    %c0_i32 = arith.constant 0 : i32
    %c0_i32_0 = arith.constant 0 : i32
    return %arg0, %c0_i32 : i32, i32
  }
}

module attributes {stable_mosaic.version = 11 : i64} {
  func.func @_gat_layer_mid_kernel(%arg0: memref<64x128xf32, #tpu.memory_space<vmem>>, %arg1: memref<64x128xf32, #tpu.memory_space<vmem>>, %arg2: memref<64x64xbf16, #tpu.memory_space<vmem>>, %arg3: memref<1x128xf32, #tpu.memory_space<vmem>>, %arg4: memref<1x128xf32, #tpu.memory_space<vmem>>, %arg5: memref<1x128xf32, #tpu.memory_space<vmem>>, %arg6: memref<128x128xbf16, #tpu.memory_space<vmem>>, %arg7: memref<128x128xbf16, #tpu.memory_space<vmem>>, %arg8: memref<64x128xf32, #tpu.memory_space<vmem>>, %arg9: memref<64x128xf32, #tpu.memory_space<vmem>>) attributes {dimension_semantics = [], scalar_prefetch = 0 : i64, scratch_operands = 0 : i64, tpu.core_type = #tpu.core_type<tc>} {
    %c0 = arith.constant 0 : index
    %c0_0 = arith.constant 0 : index
    %0 = vector.load %arg2[%c0, %c0_0] : memref<64x64xbf16, #tpu.memory_space<vmem>>, vector<64x64xbf16>
    %1 = arith.extf %0 : vector<64x64xbf16> to vector<64x64xf32>
    %c0_1 = arith.constant 0 : index
    %c0_2 = arith.constant 0 : index
    %2 = vector.load %arg1[%c0_1, %c0_2] : memref<64x128xf32, #tpu.memory_space<vmem>>, vector<64x128xf32>
    %3 = vector.extract_strided_slice %2 {offsets = [0, 0], sizes = [64, 1], strides = [1, 1]} : vector<64x128xf32> to vector<64x1xf32>
    %4 = vector.extract_strided_slice %2 {offsets = [0, 2], sizes = [64, 1], strides = [1, 1]} : vector<64x128xf32> to vector<64x1xf32>
    %5 = tpu.transpose %3, [1, 0] : vector<64x1xf32> -> vector<1x64xf32>
    %6 = vector.broadcast %4 : vector<64x1xf32> to vector<64x64xf32>
    %7 = vector.broadcast %5 : vector<1x64xf32> to vector<64x64xf32>
    %8 = arith.addf %6, %7 : vector<64x64xf32>
    %cst = arith.constant 0.000000e+00 : f32
    %9 = vector.broadcast %cst : f32 to vector<64x64xf32>
    %10 = arith.cmpf ogt, %8, %9 : vector<64x64xf32>
    %cst_3 = arith.constant 2.000000e-01 : f32
    %11 = vector.broadcast %cst_3 : f32 to vector<64x64xf32>
    %12 = arith.mulf %11, %8 : vector<64x64xf32>
    %13 = arith.select %10, %8, %12 : vector<64x64xi1>, vector<64x64xf32>
    %14 = arith.addf %13, %1 : vector<64x64xf32>
    %cst_4 = arith.constant dense<0xFF800000> : vector<64xf32>
    %15 = vector.multi_reduction <maximumf>, %14, %cst_4 [1] : vector<64x64xf32> to vector<64xf32>
    %16 = vector.shape_cast %15 : vector<64xf32> to vector<64x1xf32>
    %17 = vector.broadcast %16 : vector<64x1xf32> to vector<64x64xf32>
    %18 = arith.subf %14, %17 : vector<64x64xf32>
    %19 = math.exp %18 : vector<64x64xf32>
    %cst_5 = arith.constant dense<0.000000e+00> : vector<64xf32>
    %20 = vector.multi_reduction <add>, %19, %cst_5 [1] : vector<64x64xf32> to vector<64xf32>
    %21 = vector.shape_cast %20 : vector<64xf32> to vector<64x1xf32>
    %22 = tpu.reciprocal %21 {approx = true} : vector<64x1xf32> -> vector<64x1xf32>
    %23 = vector.broadcast %22 : vector<64x1xf32> to vector<64x64xf32>
    %24 = arith.mulf %19, %23 : vector<64x64xf32>
    %c0_6 = arith.constant 0 : index
    %c0_7 = arith.constant 0 : index
    %25 = vector.load %arg0[%c0_6, %c0_7] : memref<64x128xf32, #tpu.memory_space<vmem>>, vector<64x32xf32>
    %26 = arith.truncf %24 : vector<64x64xf32> to vector<64x64xbf16>
    %27 = arith.truncf %25 : vector<64x32xf32> to vector<64x32xbf16>
    %cst_8 = arith.constant dense<0.000000e+00> : vector<64x32xf32>
    %28 = tpu.matmul %26, %27, %cst_8 {dimension_numbers = #tpu.dot_dimension_numbers<[1], [0], [0], [1], [0, 0, 1, 1], [], []>} : vector<64x64xbf16>, vector<64x32xbf16>, vector<64x32xf32> -> vector<64x32xf32>
    %29 = vector.extract_strided_slice %2 {offsets = [0, 1], sizes = [64, 1], strides = [1, 1]} : vector<64x128xf32> to vector<64x1xf32>
    %30 = vector.extract_strided_slice %2 {offsets = [0, 3], sizes = [64, 1], strides = [1, 1]} : vector<64x128xf32> to vector<64x1xf32>
    %31 = tpu.transpose %29, [1, 0] : vector<64x1xf32> -> vector<1x64xf32>
    %32 = vector.broadcast %30 : vector<64x1xf32> to vector<64x64xf32>
    %33 = vector.broadcast %31 : vector<1x64xf32> to vector<64x64xf32>
    %34 = arith.addf %32, %33 : vector<64x64xf32>
    %cst_9 = arith.constant 0.000000e+00 : f32
    %35 = vector.broadcast %cst_9 : f32 to vector<64x64xf32>
    %36 = arith.cmpf ogt, %34, %35 : vector<64x64xf32>
    %cst_10 = arith.constant 2.000000e-01 : f32
    %37 = vector.broadcast %cst_10 : f32 to vector<64x64xf32>
    %38 = arith.mulf %37, %34 : vector<64x64xf32>
    %39 = arith.select %36, %34, %38 : vector<64x64xi1>, vector<64x64xf32>
    %40 = arith.addf %39, %1 : vector<64x64xf32>
    %cst_11 = arith.constant dense<0xFF800000> : vector<64xf32>
    %41 = vector.multi_reduction <maximumf>, %40, %cst_11 [1] : vector<64x64xf32> to vector<64xf32>
    %42 = vector.shape_cast %41 : vector<64xf32> to vector<64x1xf32>
    %43 = vector.broadcast %42 : vector<64x1xf32> to vector<64x64xf32>
    %44 = arith.subf %40, %43 : vector<64x64xf32>
    %45 = math.exp %44 : vector<64x64xf32>
    %cst_12 = arith.constant dense<0.000000e+00> : vector<64xf32>
    %46 = vector.multi_reduction <add>, %45, %cst_12 [1] : vector<64x64xf32> to vector<64xf32>
    %47 = vector.shape_cast %46 : vector<64xf32> to vector<64x1xf32>
    %48 = tpu.reciprocal %47 {approx = true} : vector<64x1xf32> -> vector<64x1xf32>
    %49 = vector.broadcast %48 : vector<64x1xf32> to vector<64x64xf32>
    %50 = arith.mulf %45, %49 : vector<64x64xf32>
    %c0_13 = arith.constant 0 : index
    %c32 = arith.constant 32 : index
    %51 = vector.load %arg0[%c0_13, %c32] : memref<64x128xf32, #tpu.memory_space<vmem>>, vector<64x32xf32>
    %52 = arith.truncf %50 : vector<64x64xf32> to vector<64x64xbf16>
    %53 = arith.truncf %51 : vector<64x32xf32> to vector<64x32xbf16>
    %cst_14 = arith.constant dense<0.000000e+00> : vector<64x32xf32>
    %54 = tpu.matmul %52, %53, %cst_14 {dimension_numbers = #tpu.dot_dimension_numbers<[1], [0], [0], [1], [0, 0, 1, 1], [], []>} : vector<64x64xbf16>, vector<64x32xbf16>, vector<64x32xf32> -> vector<64x32xf32>
    %cst_15 = arith.constant 0.000000e+00 : f32
    %55 = vector.broadcast %cst_15 : f32 to vector<64x64xf32>
    %56 = tpu.concatenate %28, %54, %55 in 1 : vector<64x32xf32>, vector<64x32xf32>, vector<64x64xf32> -> vector<64x128xf32>
    %c0_16 = arith.constant 0 : index
    %c0_17 = arith.constant 0 : index
    %57 = vector.load %arg3[%c0_16, %c0_17] : memref<1x128xf32, #tpu.memory_space<vmem>>, vector<1x128xf32>
    %58 = vector.broadcast %57 : vector<1x128xf32> to vector<64x128xf32>
    %59 = arith.addf %56, %58 : vector<64x128xf32>
    %cst_18 = arith.constant 0.000000e+00 : f32
    %60 = vector.broadcast %cst_18 : f32 to vector<64x128xf32>
    %61 = arith.cmpf ogt, %59, %60 : vector<64x128xf32>
    %cst_19 = arith.constant 0.00999999977 : f32
    %62 = vector.broadcast %cst_19 : f32 to vector<64x128xf32>
    %63 = arith.mulf %62, %59 : vector<64x128xf32>
    %64 = arith.select %61, %59, %63 : vector<64x128xi1>, vector<64x128xf32>
    %cst_20 = arith.constant dense<0.000000e+00> : vector<128xf32>
    %65 = vector.multi_reduction <add>, %64, %cst_20 [0] : vector<64x128xf32> to vector<128xf32>
    %66 = vector.shape_cast %65 : vector<128xf32> to vector<1x128xf32>
    %cst_21 = arith.constant 6.400000e+01 : f32
    %67 = vector.broadcast %cst_21 : f32 to vector<1x128xf32>
    %68 = arith.divf %66, %67 : vector<1x128xf32>
    %69 = arith.mulf %64, %64 : vector<64x128xf32>
    %cst_22 = arith.constant dense<0.000000e+00> : vector<128xf32>
    %70 = vector.multi_reduction <add>, %69, %cst_22 [0] : vector<64x128xf32> to vector<128xf32>
    %71 = vector.shape_cast %70 : vector<128xf32> to vector<1x128xf32>
    %cst_23 = arith.constant 6.400000e+01 : f32
    %72 = vector.broadcast %cst_23 : f32 to vector<1x128xf32>
    %73 = arith.divf %71, %72 : vector<1x128xf32>
    %74 = arith.mulf %68, %68 : vector<1x128xf32>
    %75 = arith.subf %73, %74 : vector<1x128xf32>
    %c0_24 = arith.constant 0 : index
    %c0_25 = arith.constant 0 : index
    %76 = vector.load %arg4[%c0_24, %c0_25] : memref<1x128xf32, #tpu.memory_space<vmem>>, vector<1x128xf32>
    %77 = vector.broadcast %68 : vector<1x128xf32> to vector<64x128xf32>
    %78 = arith.subf %64, %77 : vector<64x128xf32>
    %79 = vector.broadcast %76 : vector<1x128xf32> to vector<64x128xf32>
    %80 = arith.mulf %79, %78 : vector<64x128xf32>
    %cst_26 = arith.constant 9.99999974E-6 : f32
    %81 = vector.broadcast %cst_26 : f32 to vector<1x128xf32>
    %82 = arith.addf %75, %81 : vector<1x128xf32>
    %83 = math.rsqrt %82 : vector<1x128xf32>
    %84 = vector.broadcast %83 : vector<1x128xf32> to vector<64x128xf32>
    %85 = arith.mulf %80, %84 : vector<64x128xf32>
    %c0_27 = arith.constant 0 : index
    %c0_28 = arith.constant 0 : index
    %86 = vector.load %arg5[%c0_27, %c0_28] : memref<1x128xf32, #tpu.memory_space<vmem>>, vector<1x128xf32>
    %87 = vector.broadcast %86 : vector<1x128xf32> to vector<64x128xf32>
    %88 = arith.addf %85, %87 : vector<64x128xf32>
    %89 = arith.truncf %88 : vector<64x128xf32> to vector<64x128xbf16>
    %c0_29 = arith.constant 0 : index
    %c0_30 = arith.constant 0 : index
    %90 = vector.load %arg6[%c0_29, %c0_30] : memref<128x128xbf16, #tpu.memory_space<vmem>>, vector<128x128xbf16>
    %cst_31 = arith.constant dense<0.000000e+00> : vector<64x128xf32>
    %91 = tpu.matmul %89, %90, %cst_31 {dimension_numbers = #tpu.dot_dimension_numbers<[1], [0], [0], [1], [0, 0, 1, 1], [], []>} : vector<64x128xbf16>, vector<128x128xbf16>, vector<64x128xf32> -> vector<64x128xf32>
    %c0_32 = arith.constant 0 : index
    %c0_33 = arith.constant 0 : index
    %92 = vector.load %arg8[%c0_32, %c0_33] : memref<64x128xf32, #tpu.memory_space<vmem>>, vector<64x128xf32>
    tpu.vector_store %arg8[%c0_32, %c0_33], %91 {strides = array<i32>} : memref<64x128xf32, #tpu.memory_space<vmem>>, vector<64x128xf32>,
    %93 = arith.truncf %91 : vector<64x128xf32> to vector<64x128xbf16>
    %c0_34 = arith.constant 0 : index
    %c0_35 = arith.constant 0 : index
    %94 = vector.load %arg7[%c0_34, %c0_35] : memref<128x128xbf16, #tpu.memory_space<vmem>>, vector<128x128xbf16>
    %cst_36 = arith.constant dense<0.000000e+00> : vector<64x128xf32>
    %95 = tpu.matmul %93, %94, %cst_36 {dimension_numbers = #tpu.dot_dimension_numbers<[1], [0], [0], [1], [0, 0, 1, 1], [], []>} : vector<64x128xbf16>, vector<128x128xbf16>, vector<64x128xf32> -> vector<64x128xf32>
    %c0_37 = arith.constant 0 : index
    %c0_38 = arith.constant 0 : index
    %96 = vector.load %arg9[%c0_37, %c0_38] : memref<64x128xf32, #tpu.memory_space<vmem>>, vector<64x128xf32>
    tpu.vector_store %arg9[%c0_37, %c0_38], %95 {strides = array<i32>} : memref<64x128xf32, #tpu.memory_space<vmem>>, vector<64x128xf32>,
    return
  }
}

module attributes {stable_mosaic.version = 11 : i64} {
  func.func @_gat_layer_out_kernel(%arg0: memref<64x128xf32, #tpu.memory_space<vmem>>, %arg1: memref<64x128xf32, #tpu.memory_space<vmem>>, %arg2: memref<64x64xbf16, #tpu.memory_space<vmem>>, %arg3: memref<1x128xf32, #tpu.memory_space<vmem>>, %arg4: memref<1x128xf32, #tpu.memory_space<vmem>>, %arg5: memref<1x128xf32, #tpu.memory_space<vmem>>, %arg6: memref<128x128xbf16, #tpu.memory_space<vmem>>, %arg7: memref<1x128xf32, #tpu.memory_space<vmem>>, %arg8: memref<64x128xf32, #tpu.memory_space<vmem>>) attributes {dimension_semantics = [], scalar_prefetch = 0 : i64, scratch_operands = 0 : i64, tpu.core_type = #tpu.core_type<tc>} {
    %c0 = arith.constant 0 : index
    %c0_0 = arith.constant 0 : index
    %0 = vector.load %arg2[%c0, %c0_0] : memref<64x64xbf16, #tpu.memory_space<vmem>>, vector<64x64xbf16>
    %1 = arith.extf %0 : vector<64x64xbf16> to vector<64x64xf32>
    %c0_1 = arith.constant 0 : index
    %c0_2 = arith.constant 0 : index
    %2 = vector.load %arg1[%c0_1, %c0_2] : memref<64x128xf32, #tpu.memory_space<vmem>>, vector<64x128xf32>
    %3 = vector.extract_strided_slice %2 {offsets = [0, 0], sizes = [64, 1], strides = [1, 1]} : vector<64x128xf32> to vector<64x1xf32>
    %4 = vector.extract_strided_slice %2 {offsets = [0, 1], sizes = [64, 1], strides = [1, 1]} : vector<64x128xf32> to vector<64x1xf32>
    %5 = tpu.transpose %3, [1, 0] : vector<64x1xf32> -> vector<1x64xf32>
    %6 = vector.broadcast %4 : vector<64x1xf32> to vector<64x64xf32>
    %7 = vector.broadcast %5 : vector<1x64xf32> to vector<64x64xf32>
    %8 = arith.addf %6, %7 : vector<64x64xf32>
    %cst = arith.constant 0.000000e+00 : f32
    %9 = vector.broadcast %cst : f32 to vector<64x64xf32>
    %10 = arith.cmpf ogt, %8, %9 : vector<64x64xf32>
    %cst_3 = arith.constant 2.000000e-01 : f32
    %11 = vector.broadcast %cst_3 : f32 to vector<64x64xf32>
    %12 = arith.mulf %11, %8 : vector<64x64xf32>
    %13 = arith.select %10, %8, %12 : vector<64x64xi1>, vector<64x64xf32>
    %14 = arith.addf %13, %1 : vector<64x64xf32>
    %cst_4 = arith.constant dense<0xFF800000> : vector<64xf32>
    %15 = vector.multi_reduction <maximumf>, %14, %cst_4 [1] : vector<64x64xf32> to vector<64xf32>
    %16 = vector.shape_cast %15 : vector<64xf32> to vector<64x1xf32>
    %17 = vector.broadcast %16 : vector<64x1xf32> to vector<64x64xf32>
    %18 = arith.subf %14, %17 : vector<64x64xf32>
    %19 = math.exp %18 : vector<64x64xf32>
    %cst_5 = arith.constant dense<0.000000e+00> : vector<64xf32>
    %20 = vector.multi_reduction <add>, %19, %cst_5 [1] : vector<64x64xf32> to vector<64xf32>
    %21 = vector.shape_cast %20 : vector<64xf32> to vector<64x1xf32>
    %22 = tpu.reciprocal %21 {approx = true} : vector<64x1xf32> -> vector<64x1xf32>
    %23 = vector.broadcast %22 : vector<64x1xf32> to vector<64x64xf32>
    %24 = arith.mulf %19, %23 : vector<64x64xf32>
    %25 = arith.truncf %24 : vector<64x64xf32> to vector<64x64xbf16>
    %c0_6 = arith.constant 0 : index
    %c0_7 = arith.constant 0 : index
    %26 = vector.load %arg0[%c0_6, %c0_7] : memref<64x128xf32, #tpu.memory_space<vmem>>, vector<64x128xf32>
    %27 = arith.truncf %26 : vector<64x128xf32> to vector<64x128xbf16>
    %cst_8 = arith.constant dense<0.000000e+00> : vector<64x128xf32>
    %28 = tpu.matmul %25, %27, %cst_8 {dimension_numbers = #tpu.dot_dimension_numbers<[1], [0], [0], [1], [0, 0, 1, 1], [], []>} : vector<64x64xbf16>, vector<64x128xbf16>, vector<64x128xf32> -> vector<64x128xf32>
    %c0_9 = arith.constant 0 : index
    %c0_10 = arith.constant 0 : index
    %29 = vector.load %arg3[%c0_9, %c0_10] : memref<1x128xf32, #tpu.memory_space<vmem>>, vector<1x128xf32>
    %30 = vector.broadcast %29 : vector<1x128xf32> to vector<64x128xf32>
    %31 = arith.addf %28, %30 : vector<64x128xf32>
    %cst_11 = arith.constant 0.000000e+00 : f32
    %32 = vector.broadcast %cst_11 : f32 to vector<64x128xf32>
    %33 = arith.cmpf ogt, %31, %32 : vector<64x128xf32>
    %cst_12 = arith.constant 0.00999999977 : f32
    %34 = vector.broadcast %cst_12 : f32 to vector<64x128xf32>
    %35 = arith.mulf %34, %31 : vector<64x128xf32>
    %36 = arith.select %33, %31, %35 : vector<64x128xi1>, vector<64x128xf32>
    %cst_13 = arith.constant dense<0.000000e+00> : vector<128xf32>
    %37 = vector.multi_reduction <add>, %36, %cst_13 [0] : vector<64x128xf32> to vector<128xf32>
    %38 = vector.shape_cast %37 : vector<128xf32> to vector<1x128xf32>
    %cst_14 = arith.constant 6.400000e+01 : f32
    %39 = vector.broadcast %cst_14 : f32 to vector<1x128xf32>
    %40 = arith.divf %38, %39 : vector<1x128xf32>
    %41 = arith.mulf %36, %36 : vector<64x128xf32>
    %cst_15 = arith.constant dense<0.000000e+00> : vector<128xf32>
    %42 = vector.multi_reduction <add>, %41, %cst_15 [0] : vector<64x128xf32> to vector<128xf32>
    %43 = vector.shape_cast %42 : vector<128xf32> to vector<1x128xf32>
    %cst_16 = arith.constant 6.400000e+01 : f32
    %44 = vector.broadcast %cst_16 : f32 to vector<1x128xf32>
    %45 = arith.divf %43, %44 : vector<1x128xf32>
    %46 = arith.mulf %40, %40 : vector<1x128xf32>
    %47 = arith.subf %45, %46 : vector<1x128xf32>
    %c0_17 = arith.constant 0 : index
    %c0_18 = arith.constant 0 : index
    %48 = vector.load %arg4[%c0_17, %c0_18] : memref<1x128xf32, #tpu.memory_space<vmem>>, vector<1x128xf32>
    %49 = vector.broadcast %40 : vector<1x128xf32> to vector<64x128xf32>
    %50 = arith.subf %36, %49 : vector<64x128xf32>
    %51 = vector.broadcast %48 : vector<1x128xf32> to vector<64x128xf32>
    %52 = arith.mulf %51, %50 : vector<64x128xf32>
    %cst_19 = arith.constant 9.99999974E-6 : f32
    %53 = vector.broadcast %cst_19 : f32 to vector<1x128xf32>
    %54 = arith.addf %47, %53 : vector<1x128xf32>
    %55 = math.rsqrt %54 : vector<1x128xf32>
    %56 = vector.broadcast %55 : vector<1x128xf32> to vector<64x128xf32>
    %57 = arith.mulf %52, %56 : vector<64x128xf32>
    %c0_20 = arith.constant 0 : index
    %c0_21 = arith.constant 0 : index
    %58 = vector.load %arg5[%c0_20, %c0_21] : memref<1x128xf32, #tpu.memory_space<vmem>>, vector<1x128xf32>
    %59 = vector.broadcast %58 : vector<1x128xf32> to vector<64x128xf32>
    %60 = arith.addf %57, %59 : vector<64x128xf32>
    %61 = arith.truncf %60 : vector<64x128xf32> to vector<64x128xbf16>
    %c0_22 = arith.constant 0 : index
    %c0_23 = arith.constant 0 : index
    %62 = vector.load %arg6[%c0_22, %c0_23] : memref<128x128xbf16, #tpu.memory_space<vmem>>, vector<128x128xbf16>
    %cst_24 = arith.constant dense<0.000000e+00> : vector<64x128xf32>
    %63 = tpu.matmul %61, %62, %cst_24 {dimension_numbers = #tpu.dot_dimension_numbers<[1], [0], [0], [1], [0, 0, 1, 1], [], []>} : vector<64x128xbf16>, vector<128x128xbf16>, vector<64x128xf32> -> vector<64x128xf32>
    %c0_25 = arith.constant 0 : index
    %c0_26 = arith.constant 0 : index
    %64 = vector.load %arg7[%c0_25, %c0_26] : memref<1x128xf32, #tpu.memory_space<vmem>>, vector<1x128xf32>
    %65 = vector.broadcast %64 : vector<1x128xf32> to vector<64x128xf32>
    %66 = arith.addf %63, %65 : vector<64x128xf32>
    %cst_27 = arith.constant dense<0xFF800000> : vector<64xf32>
    %67 = vector.multi_reduction <maximumf>, %66, %cst_27 [1] : vector<64x128xf32> to vector<64xf32>
    %68 = vector.shape_cast %67 : vector<64xf32> to vector<64x1xf32>
    %69 = vector.broadcast %68 : vector<64x1xf32> to vector<64x128xf32>
    %70 = arith.subf %66, %69 : vector<64x128xf32>
    %71 = math.exp %70 : vector<64x128xf32>
    %cst_28 = arith.constant dense<0.000000e+00> : vector<64xf32>
    %72 = vector.multi_reduction <add>, %71, %cst_28 [1] : vector<64x128xf32> to vector<64xf32>
    %73 = vector.shape_cast %72 : vector<64xf32> to vector<64x1xf32>
    %74 = math.log %73 : vector<64x1xf32>
    %75 = vector.broadcast %74 : vector<64x1xf32> to vector<64x128xf32>
    %76 = arith.subf %70, %75 : vector<64x128xf32>
    %c0_29 = arith.constant 0 : index
    %c0_30 = arith.constant 0 : index
    %77 = vector.load %arg8[%c0_29, %c0_30] : memref<64x128xf32, #tpu.memory_space<vmem>>, vector<64x128xf32>
    tpu.vector_store %arg8[%c0_29, %c0_30], %76 {strides = array<i32>} : memref<64x128xf32, #tpu.memory_space<vmem>>, vector<64x128xf32>,
    return
  }
}

</mosaic_0001>

<llo_original>
// kernel: gat_forward.5
$region0: #{gat_forward.5}
  #allocation0 [shape = 'u32[]', space=smem, size = 0x4, offset = 0x4, fixed_abs, tag = 'smem constant byte address 0x4 - core index']
  #allocation1 [shape = 'u32[144,128]{1,0:T(1,128)}', space=vmem, size = 0x12000, scoped, tag = 'internal scratch']
  %s0 = inlined_call_operand.vmem [shape: f32[64,128], index: 0, kind: input, shape index: {}]
  %s1 = inlined_call_operand.vmem [shape: f32[64,128], index: 1, kind: input, shape index: {}]
  %s2 = inlined_call_operand.vmem [shape: bf16[64,64], index: 2, kind: input, shape index: {}]
  %s3 = inlined_call_operand.vmem [shape: f32[1,128], index: 3, kind: input, shape index: {}]
  %s4 = inlined_call_operand.vmem [shape: f32[1,128], index: 4, kind: input, shape index: {}]
  %s5 = inlined_call_operand.vmem [shape: f32[1,128], index: 5, kind: input, shape index: {}]
  %s6 = inlined_call_operand.vmem [shape: bf16[128,128], index: 6, kind: input, shape index: {}]
  %s7 = inlined_call_operand.vmem [shape: f32[1,128], index: 7, kind: input, shape index: {}]
  %s8 = inlined_call_operand.vmem [shape: f32[64,128], index: 8, kind: output, shape index: {}]
  %s9 = sld [smem:[#allocation0]]
  $region42: #{gat_forward.5} parent=0
    _
  %s11 = ssub.s32 1, %s9
  %s12 = scalar_select 0, %s11, %s9
  // Predicated region
  $region2: #{gat_forward.5} parent=0 // pred_check
    _
  $region3: #{gat_forward.5} parent=0 // pred_check_branch
    %14 = sbr.rel (0) target = $region5
  $region4: #{gat_forward.5} parent=0 // pred_region
    _
  $region5: #{gat_forward.5} parent=0 // pred_fallthru
    _
  // Predicated region
  $region6: #{gat_forward.5} parent=0 // pred_check
    _
  $region7: #{gat_forward.5} parent=0 // pred_check_branch
    %16 = sbr.rel (0) target = $region9
  $region8: #{gat_forward.5} parent=0 // pred_region
    _
  $region9: #{gat_forward.5} parent=0 // pred_fallthru
    _
  // Predicated region
  $region10: #{gat_forward.5} parent=0 // pred_check
    _
  $region11: #{gat_forward.5} parent=0 // pred_check_branch
    %18 = sbr.rel (0) target = $region13
  $region12: #{gat_forward.5} parent=0 // pred_region
    _
  $region13: #{gat_forward.5} parent=0 // pred_fallthru
    _
  // Predicated region
  $region14: #{gat_forward.5} parent=0 // pred_check
    _
  $region15: #{gat_forward.5} parent=0 // pred_check_branch
    %20 = sbr.rel (0) target = $region17
  $region16: #{gat_forward.5} parent=0 // pred_region
    _
  $region17: #{gat_forward.5} parent=0 // pred_fallthru
    _
  // Predicated region
  $region18: #{gat_forward.5} parent=0 // pred_check
    _
  $region19: #{gat_forward.5} parent=0 // pred_check_branch
    %22 = sbr.rel (0) target = $region21
  $region20: #{gat_forward.5} parent=0 // pred_region
    _
  $region21: #{gat_forward.5} parent=0 // pred_fallthru
    _
  // Predicated region
  $region22: #{gat_forward.5} parent=0 // pred_check
    _
  $region23: #{gat_forward.5} parent=0 // pred_check_branch
    %24 = sbr.rel (0) target = $region25
  $region24: #{gat_forward.5} parent=0 // pred_region
    _
  $region25: #{gat_forward.5} parent=0 // pred_fallthru
    _
  // Predicated region
  $region26: #{gat_forward.5} parent=0 // pred_check
    _
  $region27: #{gat_forward.5} parent=0 // pred_check_branch
    %26 = sbr.rel (0) target = $region29
  $region28: #{gat_forward.5} parent=0 // pred_region
    _
  $region29: #{gat_forward.5} parent=0 // pred_fallthru
    _
  // Predicated region
  $region30: #{gat_forward.5} parent=0 // pred_check
    _
  $region31: #{gat_forward.5} parent=0 // pred_check_branch
    %28 = sbr.rel (0) target = $region33
  $region32: #{gat_forward.5} parent=0 // pred_region
    _
  $region33: #{gat_forward.5} parent=0 // pred_fallthru
    _
  %v30 = vld [vmem:[%s2] sm:$0xf]
  %v31 = vld [vmem:[%s2 + $0x4] sm:$0xf]
  %v32 = vld [vmem:[%s2 + $0x8] sm:$0xf]
  %v33 = vld [vmem:[%s2 + $0xc] sm:$0xf]
  %v34 = vld [vmem:[%s2 + $0x10] sm:$0xf]
  %v35 = vld [vmem:[%s2 + $0x14] sm:$0xf]
  %v36 = vld [vmem:[%s2 + $0x18] sm:$0xf]
  %v37 = vld [vmem:[%s2 + $0x1c] sm:$0xf]
  %v38 = vunpack.c.l.bf16 %v30
  %v39 = vunpack.c.l.bf16 %v31
  %v40 = vunpack.c.l.bf16 %v32
  %v41 = vunpack.c.l.bf16 %v33
  %v42 = vunpack.c.l.bf16 %v34
  %v43 = vunpack.c.l.bf16 %v35
  %v44 = vunpack.c.l.bf16 %v36
  %v45 = vunpack.c.l.bf16 %v37
  %v46 = vld [vmem:[%s1] sm:$0xff]
  %v47 = vld [vmem:[%s1 + $0x8] sm:$0xff]
  %v48 = vld [vmem:[%s1 + $0x10] sm:$0xff]
  %v49 = vld [vmem:[%s1 + $0x18] sm:$0xff]
  %v50 = vld [vmem:[%s1 + $0x20] sm:$0xff]
  %v51 = vld [vmem:[%s1 + $0x28] sm:$0xff]
  %v52 = vld [vmem:[%s1 + $0x30] sm:$0xff]
  %v53 = vld [vmem:[%s1 + $0x38] sm:$0xff]
  %54 = vxpose.xlu0.b32.start [1/16] %v46, 128
  %55 = vxpose.xlu0.b32.cont [2/16] %v47, 128
  %56 = vxpose.xlu0.b32.cont [3/16] %v48, 128
  %57 = vxpose.xlu0.b32.cont [4/16] %v49, 128
  %58 = vxpose.xlu0.b32.cont [5/16] %v50, 128
  %59 = vxpose.xlu0.b32.cont [6/16] %v51, 128
  %60 = vxpose.xlu0.b32.cont [7/16] %v52, 128
  %61 = vxpose.xlu0.b32.cont [8/16] %v53, 128
  %62 = vxpose.xlu0.b32.cont [9/16] 0.0, 128
  %63 = vxpose.xlu0.b32.cont [10/16] 0.0, 128
  %64 = vxpose.xlu0.b32.cont [11/16] 0.0, 128
  %65 = vxpose.xlu0.b32.cont [12/16] 0.0, 128
  %66 = vxpose.xlu0.b32.cont [13/16] 0.0, 128
  %67 = vxpose.xlu0.b32.cont [14/16] 0.0, 128
  %68 = vxpose.xlu0.b32.cont [15/16] 0.0, 128
  %69 = vxpose.xlu0.b32.end [16/16] 0.0, 128
  %v70 = vpop.trf.xlu0
  %v71 = vpop.trf.xlu0
  %v72 = vpop.trf.xlu0
  %v73 = vpop.trf.xlu0
  %v74 = vpop.trf.xlu0
  %v75 = vpop.trf.xlu0
  %v76 = vpop.trf.xlu0
  %v77 = vpop.trf.xlu0
  %v78 = vpop.trf.xlu0
  %v79 = vpop.trf.xlu0
  %v80 = vpop.trf.xlu0
  %v81 = vpop.trf.xlu0
  %v82 = vpop.trf.xlu0
  %v83 = vpop.trf.xlu0
  %v84 = vpop.trf.xlu0
  %v85 = vpop.trf.xlu0
  %87 = vset.pattern.permute.xlu0 1
  %88 = vperm.xlu0 %87, %v46
  %v89 = vpop.permute.xlu0 %88
  %92 = vset.pattern.permute.xlu0 1
  %93 = vperm.xlu0 %92, %v47
  %v94 = vpop.permute.xlu0 %93
  %97 = vset.pattern.permute.xlu0 1
  %98 = vperm.xlu0 %97, %v48
  %v99 = vpop.permute.xlu0 %98
  %102 = vset.pattern.permute.xlu0 1
  %103 = vperm.xlu0 %102, %v49
  %v104 = vpop.permute.xlu0 %103
  %107 = vset.pattern.permute.xlu0 1
  %108 = vperm.xlu0 %107, %v50
  %v109 = vpop.permute.xlu0 %108
  %112 = vset.pattern.permute.xlu0 1
  %113 = vperm.xlu0 %112, %v51
  %v114 = vpop.permute.xlu0 %113
  %117 = vset.pattern.permute.xlu0 1
  %118 = vperm.xlu0 %117, %v52
  %v119 = vpop.permute.xlu0 %118
  %122 = vset.pattern.permute.xlu0 1
  %123 = vperm.xlu0 %122, %v53
  %v124 = vpop.permute.xlu0 %123
  %v126 = vlaneseq
  %v127 = vshrl.u32 %v126, 7
  %v128 = vsub.s32 0, %v127
  %v129 = vrot.slane %v70, %v128
  %v130 = vadd.f32 %v89, %v129
  %v131 = vadd.f32 %v94, %v129
  %v132 = vadd.f32 %v99, %v129
  %v133 = vadd.f32 %v104, %v129
  %v134 = vadd.f32 %v109, %v129
  %v135 = vadd.f32 %v114, %v129
  %v136 = vadd.f32 %v119, %v129
  %v137 = vadd.f32 %v124, %v129
  %vm138 = vcmp.gt.f32.partialorder %v130, 0.0
  %vm139 = vcmp.gt.f32.partialorder %v131, 0.0
  %vm140 = vcmp.gt.f32.partialorder %v132, 0.0
  %vm141 = vcmp.gt.f32.partialorder %v133, 0.0
  %vm142 = vcmp.gt.f32.partialorder %v134, 0.0
  %vm143 = vcmp.gt.f32.partialorder %v135, 0.0
  %vm144 = vcmp.gt.f32.partialorder %v136, 0.0
  %vm145 = vcmp.gt.f32.partialorder %v137, 0.0
  %v146 = vmul.f32 %v130, 0.2
  %v147 = vmul.f32 %v131, 0.2
  %v148 = vmul.f32 %v132, 0.2
  %v149 = vmul.f32 %v133, 0.2
  %v150 = vmul.f32 %v134, 0.2
  %v151 = vmul.f32 %v135, 0.2
  %v152 = vmul.f32 %v136, 0.2
  %v153 = vmul.f32 %v137, 0.2
  %v154 = vsel %vm138, %v130, %v146
  %v155 = vsel %vm139, %v131, %v147
  %v156 = vsel %vm140, %v132, %v148
  %v157 = vsel %vm141, %v133, %v149
  %v158 = vsel %vm142, %v134, %v150
  %v159 = vsel %vm143, %v135, %v151
  %v160 = vsel %vm144, %v136, %v152
  %v161 = vsel %vm145, %v137, %v153
  %v162 = vadd.f32 %v154, %v38
  %v163 = vadd.f32 %v155, %v39
  %v164 = vadd.f32 %v156, %v40
  %v165 = vadd.f32 %v157, %v41
  %v166 = vadd.f32 %v158, %v42
  %v167 = vadd.f32 %v159, %v43
  %v168 = vadd.f32 %v160, %v44
  %v169 = vadd.f32 %v161, %v45
  %vm170 = vcmask 523264
  %v171 = vsel %vm170, %v162, -inf
  %172 = vmax.xlane.f32.xlu0 %v171
  %v173 = vpop.xlane.xlu0 %172
  %v174 = vsel %vm170, %v163, -inf
  %175 = vmax.xlane.f32.xlu0 %v174
  %v176 = vpop.xlane.xlu0 %175
  %v177 = vsel %vm170, %v164, -inf
  %178 = vmax.xlane.f32.xlu0 %v177
  %v179 = vpop.xlane.xlu0 %178
  %v180 = vsel %vm170, %v165, -inf
  %181 = vmax.xlane.f32.xlu0 %v180
  %v182 = vpop.xlane.xlu0 %181
  %v183 = vsel %vm170, %v166, -inf
  %184 = vmax.xlane.f32.xlu0 %v183
  %v185 = vpop.xlane.xlu0 %184
  %v186 = vsel %vm170, %v167, -inf
  %187 = vmax.xlane.f32.xlu0 %v186
  %v188 = vpop.xlane.xlu0 %187
  %v189 = vsel %vm170, %v168, -inf
  %190 = vmax.xlane.f32.xlu0 %v189
  %v191 = vpop.xlane.xlu0 %190
  %v192 = vsel %vm170, %v169, -inf
  %193 = vmax.xlane.f32.xlu0 %v192
  %v194 = vpop.xlane.xlu0 %193
  %v195 = vsub.f32 %v162, %v173
  %v196 = vsub.f32 %v163, %v176
  %v197 = vsub.f32 %v164, %v179
  %v198 = vsub.f32 %v165, %v182
  %v199 = vsub.f32 %v166, %v185
  %v200 = vsub.f32 %v167, %v188
  %v201 = vsub.f32 %v168, %v191
  %v202 = vsub.f32 %v169, %v194
  %v203 = vmul.f32 %v195, 1.442695
  %v204 = vpow.pop %v203
  %v205 = vmul.f32 %v196, 1.442695
  %v206 = vpow.pop %v205
  %v207 = vmul.f32 %v197, 1.442695
  %v208 = vpow.pop %v207
  %v209 = vmul.f32 %v198, 1.442695
  %v210 = vpow.pop %v209
  %v211 = vmul.f32 %v199, 1.442695
  %v212 = vpow.pop %v211
  %v213 = vmul.f32 %v200, 1.442695
  %v214 = vpow.pop %v213
  %v215 = vmul.f32 %v201, 1.442695
  %v216 = vpow.pop %v215
  %v217 = vmul.f32 %v202, 1.442695
  %v218 = vpow.pop %v217
  %v219 = vsel %vm170, %v204, 0.0
  %220 = vadd.xlane.f32.xlu0 %v219
  %v221 = vpop.xlane.xlu0 %220
  %v222 = vsel %vm170, %v206, 0.0
  %223 = vadd.xlane.f32.xlu0 %v222
  %v224 = vpop.xlane.xlu0 %223
  %v225 = vsel %vm170, %v208, 0.0
  %226 = vadd.xlane.f32.xlu0 %v225
  %v227 = vpop.xlane.xlu0 %226
  %v228 = vsel %vm170, %v210, 0.0
  %229 = vadd.xlane.f32.xlu0 %v228
  %v230 = vpop.xlane.xlu0 %229
  %v231 = vsel %vm170, %v212, 0.0
  %232 = vadd.xlane.f32.xlu0 %v231
  %v233 = vpop.xlane.xlu0 %232
  %v234 = vsel %vm170, %v214, 0.0
  %235 = vadd.xlane.f32.xlu0 %v234
  %v236 = vpop.xlane.xlu0 %235
  %v237 = vsel %vm170, %v216, 0.0
  %238 = vadd.xlane.f32.xlu0 %v237
  %v239 = vpop.xlane.xlu0 %238
  %v240 = vsel %vm170, %v218, 0.0
  %241 = vadd.xlane.f32.xlu0 %v240
  %v242 = vpop.xlane.xlu0 %241
  %v243 = vrcp.pop %v221
  %v244 = vrcp.pop %v224
  %v245 = vrcp.pop %v227
  %v246 = vrcp.pop %v230
  %v247 = vrcp.pop %v233
  %v248 = vrcp.pop %v236
  %v249 = vrcp.pop %v239
  %v250 = vrcp.pop %v242
  %v251 = vmul.f32 %v204, %v243
  %v252 = vmul.f32 %v206, %v244
  %v253 = vmul.f32 %v208, %v245
  %v254 = vmul.f32 %v210, %v246
  %v255 = vmul.f32 %v212, %v247
  %v256 = vmul.f32 %v214, %v248
  %v257 = vmul.f32 %v216, %v249
  %v258 = vmul.f32 %v218, %v250
  %v259 = vpack.c.bf16 %v252, %v251
  %v260 = vpack.c.bf16 %v254, %v253
  %v261 = vpack.c.bf16 %v256, %v255
  %v262 = vpack.c.bf16 %v258, %v257
  %v263 = vld [vmem:[%s0] sm:$0xff]
  %v264 = vld [vmem:[%s0 + $0x8] sm:$0xff]
  %v265 = vld [vmem:[%s0 + $0x10] sm:$0xff]
  %v266 = vld [vmem:[%s0 + $0x18] sm:$0xff]
  %v267 = vld [vmem:[%s0 + $0x20] sm:$0xff]
  %v268 = vld [vmem:[%s0 + $0x28] sm:$0xff]
  %v269 = vld [vmem:[%s0 + $0x30] sm:$0xff]
  %v270 = vld [vmem:[%s0 + $0x38] sm:$0xff]
  %v271 = vpack.c.bf16 %v264, %v263
  %v272 = vpack.c.bf16 %v266, %v265
  %v273 = vpack.c.bf16 %v268, %v267
  %v274 = vpack.c.bf16 %v270, %v269
  %v275 = vld [vmem:[%s3] sm:$0x1]
  %v277 = vlaneseq
  %v278 = vshrl.u32 %v277, 7
  %v279 = vsub.s32 0, %v278
  %v280 = vrot.slane %v275, %v279
  %v283 = vsel %vm170, %v259, 0
  %v286 = vsel %vm170, %v260, 0
  %v289 = vsel %vm170, %v261, 0
  %v292 = vsel %vm170, %v262, 0
  %294 = vmatprep.subr.bf16.mxu0 0
  %295 = vmatpush1.bf16.msra.mxu0 0
  %296 = vmatprep.subr.bf16.mxu0 0
  %297 = vmatpush1.bf16.msra.mxu0 0
  %298 = vmatprep.subr.bf16.mxu0 0
  %299 = vmatpush1.bf16.msra.mxu0 0
  %300 = vmatprep.subr.bf16.mxu0 0
  %301 = vmatpush1.bf16.msra.mxu0 0
  %302 = vmatprep.subr.bf16.mxu0 0
  %303 = vmatpush1.bf16.msra.mxu0 %v274
  %304 = vmatprep.subr.bf16.mxu0 0
  %305 = vmatpush1.bf16.msra.mxu0 %v273
  %306 = vmatprep.subr.bf16.mxu0 0
  %307 = vmatpush1.bf16.msra.mxu0 %v272
  %308 = vmatprep.subr.bf16.mxu0 0
  %309 = vmatpush1.bf16.msra.mxu0 %v271
  %310 = vmatprep.subr.bf16.mxu0 0
  %311 = vmatpush2.bf16.msra.mxu0 0
  %312 = vmatprep.subr.bf16.mxu0 0
  %313 = vmatpush2.bf16.msra.mxu0 0
  %314 = vmatprep.subr.bf16.mxu0 0
  %315 = vmatpush2.bf16.msra.mxu0 0
  %316 = vmatprep.subr.bf16.mxu0 0
  %317 = vmatpush2.bf16.msra.mxu0 0
  %318 = vmatprep.subr.bf16.mxu0 0
  %319 = vmatpush2.bf16.msra.mxu0 0
  %320 = vmatprep.subr.bf16.mxu0 0
  %321 = vmatpush2.bf16.msra.mxu0 0
  %322 = vmatprep.subr.bf16.mxu0 0
  %323 = vmatpush2.bf16.msra.mxu0 0
  %324 = vmatprep.subr.bf16.mxu0 0
  %325 = vmatpush2.bf16.msra.mxu0 0
  %326 = vmatprep.mubr.bf16.mxu0 0
  %327 = vmatmul.mubr.bf16.gmra.mxu0 %v283
  %v328 = vpop.f32.mrf.mxu0
  %v329 = vadd.f32 %v280, %v328
  %v330 = vpop.f32.mrf.mxu0
  %v331 = vpop.f32.mrf.mxu0
  %v332 = vadd.f32 %v280, %v331
  %v333 = vpop.f32.mrf.mxu0
  %334 = vmatprep.mubr.bf16.mxu0 0
  %335 = vmatmul.mubr.bf16.gmra.mxu0 %v286
  %v336 = vpop.f32.mrf.mxu0
  %v337 = vadd.f32 %v280, %v336
  %v338 = vpop.f32.mrf.mxu0
  %v339 = vpop.f32.mrf.mxu0
  %v340 = vadd.f32 %v280, %v339
  %v341 = vpop.f32.mrf.mxu0
  %342 = vmatprep.mubr.bf16.mxu0 0
  %343 = vmatmul.mubr.bf16.gmra.mxu0 %v289
  %v344 = vpop.f32.mrf.mxu0
  %v345 = vadd.f32 %v280, %v344
  %v346 = vpop.f32.mrf.mxu0
  %v347 = vpop.f32.mrf.mxu0
  %v348 = vadd.f32 %v280, %v347
  %v349 = vpop.f32.mrf.mxu0
  %350 = vmatprep.mubr.bf16.mxu0 0
  %351 = vmatmul.mubr.bf16.gmra.mxu0 %v292
  %v352 = vpop.f32.mrf.mxu0
  %v353 = vadd.f32 %v280, %v352
  %v354 = vpop.f32.mrf.mxu0
  %v355 = vpop.f32.mrf.mxu0
  %v356 = vadd.f32 %v280, %v355
  %v357 = vpop.f32.mrf.mxu0
  %358 = vdwg.mxu0
  %vm359 = vcmp.gt.f32.partialorder %v329, 0.0
  %vm360 = vcmp.gt.f32.partialorder %v332, 0.0
  %vm361 = vcmp.gt.f32.partialorder %v337, 0.0
  %vm362 = vcmp.gt.f32.partialorder %v340, 0.0
  %vm363 = vcmp.gt.f32.partialorder %v345, 0.0
  %vm364 = vcmp.gt.f32.partialorder %v348, 0.0
  %vm365 = vcmp.gt.f32.partialorder %v353, 0.0
  %vm366 = vcmp.gt.f32.partialorder %v356, 0.0
  %v367 = vmul.f32 %v329, 0.01
  %v368 = vmul.f32 %v332, 0.01
  %v369 = vmul.f32 %v337, 0.01
  %v370 = vmul.f32 %v340, 0.01
  %v371 = vmul.f32 %v345, 0.01
  %v372 = vmul.f32 %v348, 0.01
  %v373 = vmul.f32 %v353, 0.01
  %v374 = vmul.f32 %v356, 0.01
  %v375 = vsel %vm359, %v329, %v367
  %v376 = vsel %vm360, %v332, %v368
  %v377 = vsel %vm361, %v337, %v369
  %v378 = vsel %vm362, %v340, %v370
  %v379 = vsel %vm363, %v345, %v371
  %v380 = vsel %vm364, %v348, %v372
  %v381 = vsel %vm365, %v353, %v373
  %v382 = vsel %vm366, %v356, %v374
  %v383 = vadd.f32 %v375, %v376
  %v384 = vadd.f32 %v383, %v377
  %v385 = vadd.f32 %v384, %v378
  %v386 = vadd.f32 %v385, %v379
  %v387 = vadd.f32 %v386, %v380
  %v388 = vadd.f32 %v387, %v381
  %v389 = vadd.f32 %v388, %v382
  %v390 = vrot.slane %v389, 4
  %v391 = vadd.f32 %v389, %v390
  %v392 = vrot.slane %v391, 2
  %v393 = vadd.f32 %v391, %v392
  %v394 = vrot.slane %v393, 1
  %v395 = vadd.f32 %v393, %v394
  %v396 = vrcp.pop 64.0
  %v397 = vmul.f32 %v395, %v396
  %v398 = vmul.f32 %v375, %v375
  %v399 = vmul.f32 %v376, %v376
  %v400 = vmul.f32 %v377, %v377
  %v401 = vmul.f32 %v378, %v378
  %v402 = vmul.f32 %v379, %v379
  %v403 = vmul.f32 %v380, %v380
  %v404 = vmul.f32 %v381, %v381
  %v405 = vmul.f32 %v382, %v382
  %v406 = vadd.f32 %v398, %v399
  %v407 = vadd.f32 %v406, %v400
  %v408 = vadd.f32 %v407, %v401
  %v409 = vadd.f32 %v408, %v402
  %v410 = vadd.f32 %v409, %v403
  %v411 = vadd.f32 %v410, %v404
  %v412 = vadd.f32 %v411, %v405
  %v413 = vrot.slane %v412, 4
  %v414 = vadd.f32 %v412, %v413
  %v415 = vrot.slane %v414, 2
  %v416 = vadd.f32 %v414, %v415
  %v417 = vrot.slane %v416, 1
  %v418 = vadd.f32 %v416, %v417
  %v419 = vmul.f32 %v418, %v396
  %v420 = vmul.f32 %v397, %v397
  %v421 = vsub.f32 %v419, %v420
  %v422 = vld [vmem:[%s4] sm:$0x1]
  %v423 = vsub.f32 %v375, %v397
  %v424 = vsub.f32 %v376, %v397
  %v425 = vsub.f32 %v377, %v397
  %v426 = vsub.f32 %v378, %v397
  %v427 = vsub.f32 %v379, %v397
  %v428 = vsub.f32 %v380, %v397
  %v429 = vsub.f32 %v381, %v397
  %v430 = vsub.f32 %v382, %v397
  %v432 = vlaneseq
  %v433 = vshrl.u32 %v432, 7
  %v434 = vsub.s32 0, %v433
  %v435 = vrot.slane %v422, %v434
  %v437 = vmul.f32 %v435, %v423
  %v438 = vmul.f32 %v435, %v424
  %v439 = vmul.f32 %v435, %v425
  %v440 = vmul.f32 %v435, %v426
  %v441 = vmul.f32 %v435, %v427
  %v442 = vmul.f32 %v435, %v428
  %v443 = vmul.f32 %v435, %v429
  %v444 = vmul.f32 %v435, %v430
  %v445 = vadd.f32 %v421, 1e-05
  %v446 = vrsqrt.pop %v445
  %v447 = vmul.f32 %v437, %v446
  %v448 = vmul.f32 %v438, %v446
  %v449 = vmul.f32 %v439, %v446
  %v450 = vmul.f32 %v440, %v446
  %v451 = vmul.f32 %v441, %v446
  %v452 = vmul.f32 %v442, %v446
  %v453 = vmul.f32 %v443, %v446
  %v454 = vmul.f32 %v444, %v446
  %v455 = vld [vmem:[%s5] sm:$0x1]
  %v457 = vlaneseq
  %v458 = vshrl.u32 %v457, 7
  %v459 = vsub.s32 0, %v458
  %v460 = vrot.slane %v455, %v459
  %v462 = vadd.f32 %v447, %v460
  %v463 = vadd.f32 %v448, %v460
  %v464 = vadd.f32 %v449, %v460
  %v465 = vadd.f32 %v450, %v460
  %v466 = vadd.f32 %v451, %v460
  %v467 = vadd.f32 %v452, %v460
  %v468 = vadd.f32 %v453, %v460
  %v469 = vadd.f32 %v454, %v460
  %v470 = vpack.c.bf16 %v463, %v462
  %v471 = vpack.c.bf16 %v465, %v464
  %v472 = vpack.c.bf16 %v467, %v466
  %v473 = vpack.c.bf16 %v469, %v468
  %v474 = vld [vmem:[%s6] sm:$0xf]
  %v475 = vld [vmem:[%s6 + $0x4] sm:$0xf]
  %v476 = vld [vmem:[%s6 + $0x8] sm:$0xf]
  %v477 = vld [vmem:[%s6 + $0xc] sm:$0xf]
  %v478 = vld [vmem:[%s6 + $0x10] sm:$0xf]
  %v479 = vld [vmem:[%s6 + $0x14] sm:$0xf]
  %v480 = vld [vmem:[%s6 + $0x18] sm:$0xf]
  %v481 = vld [vmem:[%s6 + $0x1c] sm:$0xf]
  %v482 = vld [vmem:[%s6 + $0x20] sm:$0xf]
  %v483 = vld [vmem:[%s6 + $0x24] sm:$0xf]
  %v484 = vld [vmem:[%s6 + $0x28] sm:$0xf]
  %v485 = vld [vmem:[%s6 + $0x2c] sm:$0xf]
  %v486 = vld [vmem:[%s6 + $0x30] sm:$0xf]
  %v487 = vld [vmem:[%s6 + $0x34] sm:$0xf]
  %v488 = vld [vmem:[%s6 + $0x38] sm:$0xf]
  %v489 = vld [vmem:[%s6 + $0x3c] sm:$0xf]
  %v490 = vld [vmem:[%s7] sm:$0x1]
  %v492 = vlaneseq
  %v493 = vshrl.u32 %v492, 7
  %v494 = vsub.s32 0, %v493
  %v495 = vrot.slane %v490, %v494
  %v513 = vunpack.c.l.b16 %v474
  %v514 = vunpack.c.l.b16 %v475
  %v515 = vunpack.c.l.b16 %v476
  %v516 = vunpack.c.l.b16 %v477
  %v517 = vunpack.c.l.b16 %v478
  %v518 = vunpack.c.l.b16 %v479
  %v519 = vunpack.c.l.b16 %v480
  %v520 = vunpack.c.l.b16 %v481
  %v521 = vunpack.c.l.b16 %v482
  %v522 = vunpack.c.l.b16 %v483
  %v523 = vunpack.c.l.b16 %v484
  %v524 = vunpack.c.l.b16 %v485
  %v525 = vunpack.c.l.b16 %v486
  %v526 = vunpack.c.l.b16 %v487
  %v527 = vunpack.c.l.b16 %v488
  %v528 = vunpack.c.l.b16 %v489
  %v529 = vpack.c.b16 %v514, %v513
  %v530 = vpack.c.b16 %v516, %v515
  %v531 = vpack.c.b16 %v518, %v517
  %v532 = vpack.c.b16 %v520, %v519
  %v533 = vpack.c.b16 %v522, %v521
  %v534 = vpack.c.b16 %v524, %v523
  %v535 = vpack.c.b16 %v526, %v525
  %v536 = vpack.c.b16 %v528, %v527
  %545 = vmatprep.subr.bf16.mxu0 0
  %546 = vmatpush1.bf16.msra.mxu0 %v536
  %547 = vmatprep.subr.bf16.mxu0 0
  %548 = vmatpush1.bf16.msra.mxu0 %v535
  %549 = vmatprep.subr.bf16.mxu0 0
  %550 = vmatpush1.bf16.msra.mxu0 %v534
  %551 = vmatprep.subr.bf16.mxu0 0
  %552 = vmatpush1.bf16.msra.mxu0 %v533
  %553 = vmatprep.subr.bf16.mxu0 0
  %554 = vmatpush1.bf16.msra.mxu0 %v532
  %555 = vmatprep.subr.bf16.mxu0 0
  %556 = vmatpush1.bf16.msra.mxu0 %v531
  %557 = vmatprep.subr.bf16.mxu0 0
  %558 = vmatpush1.bf16.msra.mxu0 %v530
  %559 = vmatprep.subr.bf16.mxu0 0
  %560 = vmatpush1.bf16.msra.mxu0 %v529
  %561 = vmatprep.subr.bf16.mxu0 0
  %562 = vmatpush2.bf16.msra.mxu0 0
  %563 = vmatprep.subr.bf16.mxu0 0
  %564 = vmatpush2.bf16.msra.mxu0 0
  %565 = vmatprep.subr.bf16.mxu0 0
  %566 = vmatpush2.bf16.msra.mxu0 0
  %567 = vmatprep.subr.bf16.mxu0 0
  %568 = vmatpush2.bf16.msra.mxu0 0
  %569 = vmatprep.subr.bf16.mxu0 0
  %570 = vmatpush2.bf16.msra.mxu0 0
  %571 = vmatprep.subr.bf16.mxu0 0
  %572 = vmatpush2.bf16.msra.mxu0 0
  %573 = vmatprep.subr.bf16.mxu0 0
  %574 = vmatpush2.bf16.msra.mxu0 0
  %575 = vmatprep.subr.bf16.mxu0 0
  %576 = vmatpush2.bf16.msra.mxu0 0
  %577 = vmatprep.mubr.bf16.mxu0 0
  %578 = vmatmul.mubr.bf16.gmra.mxu0 %v470
  %v579 = vpop.f32.mrf.mxu0
  %v580 = vadd.f32 %v495, %v579
  %v581 = vpop.f32.mrf.mxu0
  %v582 = vpop.f32.mrf.mxu0
  %v583 = vadd.f32 %v495, %v582
  %v584 = vpop.f32.mrf.mxu0
  %585 = vmatprep.mubr.bf16.mxu0 0
  %586 = vmatmul.mubr.bf16.gmra.mxu0 %v471
  %v587 = vpop.f32.mrf.mxu0
  %v588 = vadd.f32 %v495, %v587
  %v589 = vpop.f32.mrf.mxu0
  %v590 = vpop.f32.mrf.mxu0
  %v591 = vadd.f32 %v495, %v590
  %v592 = vpop.f32.mrf.mxu0
  %593 = vmatprep.mubr.bf16.mxu0 0
  %594 = vmatmul.mubr.bf16.gmra.mxu0 %v472
  %v595 = vpop.f32.mrf.mxu0
  %v596 = vadd.f32 %v495, %v595
  %v597 = vpop.f32.mrf.mxu0
  %v598 = vpop.f32.mrf.mxu0
  %v599 = vadd.f32 %v495, %v598
  %v600 = vpop.f32.mrf.mxu0
  %601 = vmatprep.mubr.bf16.mxu0 0
  %602 = vmatmul.mubr.bf16.gmra.mxu0 %v473
  %v603 = vpop.f32.mrf.mxu0
  %v604 = vadd.f32 %v495, %v603
  %v605 = vpop.f32.mrf.mxu0
  %v606 = vpop.f32.mrf.mxu0
  %v607 = vadd.f32 %v495, %v606
  %v608 = vpop.f32.mrf.mxu0
  %609 = vdwg.mxu0
  %610 = vmax.xlane.f32.xlu0 %v580
  %v611 = vpop.xlane.xlu0 %610
  %612 = vmax.xlane.f32.xlu0 %v583
  %v613 = vpop.xlane.xlu0 %612
  %614 = vmax.xlane.f32.xlu0 %v588
  %v615 = vpop.xlane.xlu0 %614
  %616 = vmax.xlane.f32.xlu0 %v591
  %v617 = vpop.xlane.xlu0 %616
  %618 = vmax.xlane.f32.xlu0 %v596
  %v619 = vpop.xlane.xlu0 %618
  %620 = vmax.xlane.f32.xlu0 %v599
  %v621 = vpop.xlane.xlu0 %620
  %622 = vmax.xlane.f32.xlu0 %v604
  %v623 = vpop.xlane.xlu0 %622
  %624 = vmax.xlane.f32.xlu0 %v607
  %v625 = vpop.xlane.xlu0 %624
  %v626 = vsub.f32 %v580, %v611
  %v627 = vsub.f32 %v583, %v613
  %v628 = vsub.f32 %v588, %v615
  %v629 = vsub.f32 %v591, %v617
  %v630 = vsub.f32 %v596, %v619
  %v631 = vsub.f32 %v599, %v621
  %v632 = vsub.f32 %v604, %v623
  %v633 = vsub.f32 %v607, %v625
  %v634 = vmul.f32 %v626, 1.442695
  %v635 = vpow.pop %v634
  %v636 = vmul.f32 %v627, 1.442695
  %v637 = vpow.pop %v636
  %v638 = vmul.f32 %v628, 1.442695
  %v639 = vpow.pop %v638
  %v640 = vmul.f32 %v629, 1.442695
  %v641 = vpow.pop %v640
  %v642 = vmul.f32 %v630, 1.442695
  %v643 = vpow.pop %v642
  %v644 = vmul.f32 %v631, 1.442695
  %v645 = vpow.pop %v644
  %v646 = vmul.f32 %v632, 1.442695
  %v647 = vpow.pop %v646
  %v648 = vmul.f32 %v633, 1.442695
  %v649 = vpow.pop %v648
  %650 = vadd.xlane.f32.xlu0 %v635
  %v651 = vpop.xlane.xlu0 %650
  %652 = vadd.xlane.f32.xlu0 %v637
  %v653 = vpop.xlane.xlu0 %652
  %654 = vadd.xlane.f32.xlu0 %v639
  %v655 = vpop.xlane.xlu0 %654
  %656 = vadd.xlane.f32.xlu0 %v641
  %v657 = vpop.xlane.xlu0 %656
  %658 = vadd.xlane.f32.xlu0 %v643
  %v659 = vpop.xlane.xlu0 %658
  %660 = vadd.xlane.f32.xlu0 %v645
  %v661 = vpop.xlane.xlu0 %660
  %662 = vadd.xlane.f32.xlu0 %v647
  %v663 = vpop.xlane.xlu0 %662
  %664 = vadd.xlane.f32.xlu0 %v649
  %v665 = vpop.xlane.xlu0 %664
  %v666 = vlog2.pop %v651
  %v667 = vmul.f32 %v666, 0.6931472
  %v668 = vlog2.pop %v653
  %v669 = vmul.f32 %v668, 0.6931472
  %v670 = vlog2.pop %v655
  %v671 = vmul.f32 %v670, 0.6931472
  %v672 = vlog2.pop %v657
  %v673 = vmul.f32 %v672, 0.6931472
  %v674 = vlog2.pop %v659
  %v675 = vmul.f32 %v674, 0.6931472
  %v676 = vlog2.pop %v661
  %v677 = vmul.f32 %v676, 0.6931472
  %v678 = vlog2.pop %v663
  %v679 = vmul.f32 %v678, 0.6931472
  %v680 = vlog2.pop %v665
  %v681 = vmul.f32 %v680, 0.6931472
  %v682 = vsub.f32 %v626, %v667
  %v683 = vsub.f32 %v627, %v669
  %v684 = vsub.f32 %v628, %v671
  %v685 = vsub.f32 %v629, %v673
  %v686 = vsub.f32 %v630, %v675
  %v687 = vsub.f32 %v631, %v677
  %v688 = vsub.f32 %v632, %v679
  %v689 = vsub.f32 %v633, %v681
  %690 = vst [vmem:[%s8] sm:$0xff] %v682
  %691 = vst [vmem:[%s8 + $0x8] sm:$0xff] %v683
  %692 = vst [vmem:[%s8 + $0x10] sm:$0xff] %v684
  %693 = vst [vmem:[%s8 + $0x18] sm:$0xff] %v685
  %694 = vst [vmem:[%s8 + $0x20] sm:$0xff] %v686
  %695 = vst [vmem:[%s8 + $0x28] sm:$0xff] %v687
  %696 = vst [vmem:[%s8 + $0x30] sm:$0xff] %v688
  %697 = vst [vmem:[%s8 + $0x38] sm:$0xff] %v689
  // Predicated region
  $region34: #{gat_forward.5} parent=0 // pred_check
    _
  $region35: #{gat_forward.5} parent=0 // pred_check_branch
    %699 = sbr.rel (0) target = $region37
  $region36: #{gat_forward.5} parent=0 // pred_region
    _
  $region37: #{gat_forward.5} parent=0 // pred_fallthru
    _
  // Predicated region
  $region38: #{gat_forward.5} parent=0 // pred_check
    _
  $region39: #{gat_forward.5} parent=0 // pred_check_branch
    %701 = sbr.rel (0) target = $region41
  $region40: #{gat_forward.5} parent=0 // pred_region
    _
  $region41: #{gat_forward.5} parent=0 // pred_fallthru
    _

// kernel: gat_forward.4
$region0: #{gat_forward.4}
  #allocation0 [shape = 'u32[]', space=smem, size = 0x4, offset = 0x4, fixed_abs, tag = 'smem constant byte address 0x4 - core index']
  #allocation1 [shape = 'u32[144,128]{1,0:T(1,128)}', space=vmem, size = 0x12000, scoped, tag = 'internal scratch']
  %s0 = inlined_call_operand.vmem [shape: f32[64,128], index: 0, kind: input, shape index: {}]
  %s1 = inlined_call_operand.vmem [shape: f32[64,128], index: 1, kind: input, shape index: {}]
  %s2 = inlined_call_operand.vmem [shape: bf16[64,64], index: 2, kind: input, shape index: {}]
  %s3 = inlined_call_operand.vmem [shape: f32[1,128], index: 3, kind: input, shape index: {}]
  %s4 = inlined_call_operand.vmem [shape: f32[1,128], index: 4, kind: input, shape index: {}]
  %s5 = inlined_call_operand.vmem [shape: f32[1,128], index: 5, kind: input, shape index: {}]
  %s6 = inlined_call_operand.vmem [shape: bf16[128,128], index: 6, kind: input, shape index: {}]
  %s7 = inlined_call_operand.vmem [shape: bf16[128,128], index: 7, kind: input, shape index: {}]
  %s8 = inlined_call_operand.vmem [shape: f32[64,128], index: 8, kind: output, shape index: {0}]
  %s9 = inlined_call_operand.vmem [shape: f32[64,128], index: 9, kind: output, shape index: {1}]
  %10 = xla_tuple %s8, %s9
  %s11 = sld [smem:[#allocation0]]
  $region50: #{gat_forward.4} parent=0
    _
  %s13 = ssub.s32 1, %s11
  %s14 = scalar_select 0, %s13, %s11
  // Predicated region
  $region2: #{gat_forward.4} parent=0 // pred_check
    _
  $region3: #{gat_forward.4} parent=0 // pred_check_branch
    %16 = sbr.rel (0) target = $region5
  $region4: #{gat_forward.4} parent=0 // pred_region
    _
  $region5: #{gat_forward.4} parent=0 // pred_fallthru
    _
  // Predicated region
  $region6: #{gat_forward.4} parent=0 // pred_check
    _
  $region7: #{gat_forward.4} parent=0 // pred_check_branch
    %18 = sbr.rel (0) target = $region9
  $region8: #{gat_forward.4} parent=0 // pred_region
    _
  $region9: #{gat_forward.4} parent=0 // pred_fallthru
    _
  // Predicated region
  $region10: #{gat_forward.4} parent=0 // pred_check
    _
  $region11: #{gat_forward.4} parent=0 // pred_check_branch
    %20 = sbr.rel (0) target = $region13
  $region12: #{gat_forward.4} parent=0 // pred_region
    _
  $region13: #{gat_forward.4} parent=0 // pred_fallthru
    _
  // Predicated region
  $region14: #{gat_forward.4} parent=0 // pred_check
    _
  $region15: #{gat_forward.4} parent=0 // pred_check_branch
    %22 = sbr.rel (0) target = $region17
  $region16: #{gat_forward.4} parent=0 // pred_region
    _
  $region17: #{gat_forward.4} parent=0 // pred_fallthru
    _
  // Predicated region
  $region18: #{gat_forward.4} parent=0 // pred_check
    _
  $region19: #{gat_forward.4} parent=0 // pred_check_branch
    %24 = sbr.rel (0) target = $region21
  $region20: #{gat_forward.4} parent=0 // pred_region
    _
  $region21: #{gat_forward.4} parent=0 // pred_fallthru
    _
  // Predicated region
  $region22: #{gat_forward.4} parent=0 // pred_check
    _
  $region23: #{gat_forward.4} parent=0 // pred_check_branch
    %26 = sbr.rel (0) target = $region25
  $region24: #{gat_forward.4} parent=0 // pred_region
    _
  $region25: #{gat_forward.4} parent=0 // pred_fallthru
    _
  // Predicated region
  $region26: #{gat_forward.4} parent=0 // pred_check
    _
  $region27: #{gat_forward.4} parent=0 // pred_check_branch
    %28 = sbr.rel (0) target = $region29
  $region28: #{gat_forward.4} parent=0 // pred_region
    _
  $region29: #{gat_forward.4} parent=0 // pred_fallthru
    _
  // Predicated region
  $region30: #{gat_forward.4} parent=0 // pred_check
    _
  $region31: #{gat_forward.4} parent=0 // pred_check_branch
    %30 = sbr.rel (0) target = $region33
  $region32: #{gat_forward.4} parent=0 // pred_region
    _
  $region33: #{gat_forward.4} parent=0 // pred_fallthru
    _
  %v32 = vld [vmem:[%s2] sm:$0xf]
  %v33 = vld [vmem:[%s2 + $0x4] sm:$0xf]
  %v34 = vld [vmem:[%s2 + $0x8] sm:$0xf]
  %v35 = vld [vmem:[%s2 + $0xc] sm:$0xf]
  %v36 = vld [vmem:[%s2 + $0x10] sm:$0xf]
  %v37 = vld [vmem:[%s2 + $0x14] sm:$0xf]
  %v38 = vld [vmem:[%s2 + $0x18] sm:$0xf]
  %v39 = vld [vmem:[%s2 + $0x1c] sm:$0xf]
  %v40 = vunpack.c.l.bf16 %v32
  %v41 = vunpack.c.l.bf16 %v33
  %v42 = vunpack.c.l.bf16 %v34
  %v43 = vunpack.c.l.bf16 %v35
  %v44 = vunpack.c.l.bf16 %v36
  %v45 = vunpack.c.l.bf16 %v37
  %v46 = vunpack.c.l.bf16 %v38
  %v47 = vunpack.c.l.bf16 %v39
  %v48 = vld [vmem:[%s1] sm:$0xff]
  %v49 = vld [vmem:[%s1 + $0x8] sm:$0xff]
  %v50 = vld [vmem:[%s1 + $0x10] sm:$0xff]
  %v51 = vld [vmem:[%s1 + $0x18] sm:$0xff]
  %v52 = vld [vmem:[%s1 + $0x20] sm:$0xff]
  %v53 = vld [vmem:[%s1 + $0x28] sm:$0xff]
  %v54 = vld [vmem:[%s1 + $0x30] sm:$0xff]
  %v55 = vld [vmem:[%s1 + $0x38] sm:$0xff]
  %56 = vxpose.xlu0.b32.start [1/16] %v48, 128
  %57 = vxpose.xlu0.b32.cont [2/16] %v49, 128
  %58 = vxpose.xlu0.b32.cont [3/16] %v50, 128
  %59 = vxpose.xlu0.b32.cont [4/16] %v51, 128
  %60 = vxpose.xlu0.b32.cont [5/16] %v52, 128
  %61 = vxpose.xlu0.b32.cont [6/16] %v53, 128
  %62 = vxpose.xlu0.b32.cont [7/16] %v54, 128
  %63 = vxpose.xlu0.b32.cont [8/16] %v55, 128
  %64 = vxpose.xlu0.b32.cont [9/16] 0.0, 128
  %65 = vxpose.xlu0.b32.cont [10/16] 0.0, 128
  %66 = vxpose.xlu0.b32.cont [11/16] 0.0, 128
  %67 = vxpose.xlu0.b32.cont [12/16] 0.0, 128
  %68 = vxpose.xlu0.b32.cont [13/16] 0.0, 128
  %69 = vxpose.xlu0.b32.cont [14/16] 0.0, 128
  %70 = vxpose.xlu0.b32.cont [15/16] 0.0, 128
  %71 = vxpose.xlu0.b32.end [16/16] 0.0, 128
  %v72 = vpop.trf.xlu0
  %v73 = vpop.trf.xlu0
  %v74 = vpop.trf.xlu0
  %v75 = vpop.trf.xlu0
  %v76 = vpop.trf.xlu0
  %v77 = vpop.trf.xlu0
  %v78 = vpop.trf.xlu0
  %v79 = vpop.trf.xlu0
  %v80 = vpop.trf.xlu0
  %v81 = vpop.trf.xlu0
  %v82 = vpop.trf.xlu0
  %v83 = vpop.trf.xlu0
  %v84 = vpop.trf.xlu0
  %v85 = vpop.trf.xlu0
  %v86 = vpop.trf.xlu0
  %v87 = vpop.trf.xlu0
  %89 = vset.pattern.permute.xlu0 2
  %90 = vperm.xlu0 %89, %v48
  %v91 = vpop.permute.xlu0 %90
  %94 = vset.pattern.permute.xlu0 2
  %95 = vperm.xlu0 %94, %v49
  %v96 = vpop.permute.xlu0 %95
  %99 = vset.pattern.permute.xlu0 2
  %100 = vperm.xlu0 %99, %v50
  %v101 = vpop.permute.xlu0 %100
  %104 = vset.pattern.permute.xlu0 2
  %105 = vperm.xlu0 %104, %v51
  %v106 = vpop.permute.xlu0 %105
  %109 = vset.pattern.permute.xlu0 2
  %110 = vperm.xlu0 %109, %v52
  %v111 = vpop.permute.xlu0 %110
  %114 = vset.pattern.permute.xlu0 2
  %115 = vperm.xlu0 %114, %v53
  %v116 = vpop.permute.xlu0 %115
  %119 = vset.pattern.permute.xlu0 2
  %120 = vperm.xlu0 %119, %v54
  %v121 = vpop.permute.xlu0 %120
  %124 = vset.pattern.permute.xlu0 2
  %125 = vperm.xlu0 %124, %v55
  %v126 = vpop.permute.xlu0 %125
  %v128 = vlaneseq
  %v129 = vshrl.u32 %v128, 7
  %v130 = vsub.s32 0, %v129
  %v131 = vrot.slane %v72, %v130
  %v132 = vadd.f32 %v91, %v131
  %v133 = vadd.f32 %v96, %v131
  %v134 = vadd.f32 %v101, %v131
  %v135 = vadd.f32 %v106, %v131
  %v136 = vadd.f32 %v111, %v131
  %v137 = vadd.f32 %v116, %v131
  %v138 = vadd.f32 %v121, %v131
  %v139 = vadd.f32 %v126, %v131
  %vm140 = vcmp.gt.f32.partialorder %v132, 0.0
  %vm141 = vcmp.gt.f32.partialorder %v133, 0.0
  %vm142 = vcmp.gt.f32.partialorder %v134, 0.0
  %vm143 = vcmp.gt.f32.partialorder %v135, 0.0
  %vm144 = vcmp.gt.f32.partialorder %v136, 0.0
  %vm145 = vcmp.gt.f32.partialorder %v137, 0.0
  %vm146 = vcmp.gt.f32.partialorder %v138, 0.0
  %vm147 = vcmp.gt.f32.partialorder %v139, 0.0
  %v148 = vmul.f32 %v132, 0.2
  %v149 = vmul.f32 %v133, 0.2
  %v150 = vmul.f32 %v134, 0.2
  %v151 = vmul.f32 %v135, 0.2
  %v152 = vmul.f32 %v136, 0.2
  %v153 = vmul.f32 %v137, 0.2
  %v154 = vmul.f32 %v138, 0.2
  %v155 = vmul.f32 %v139, 0.2
  %v156 = vsel %vm140, %v132, %v148
  %v157 = vsel %vm141, %v133, %v149
  %v158 = vsel %vm142, %v134, %v150
  %v159 = vsel %vm143, %v135, %v151
  %v160 = vsel %vm144, %v136, %v152
  %v161 = vsel %vm145, %v137, %v153
  %v162 = vsel %vm146, %v138, %v154
  %v163 = vsel %vm147, %v139, %v155
  %v164 = vadd.f32 %v156, %v40
  %v165 = vadd.f32 %v157, %v41
  %v166 = vadd.f32 %v158, %v42
  %v167 = vadd.f32 %v159, %v43
  %v168 = vadd.f32 %v160, %v44
  %v169 = vadd.f32 %v161, %v45
  %v170 = vadd.f32 %v162, %v46
  %v171 = vadd.f32 %v163, %v47
  %vm172 = vcmask 523264
  %v173 = vsel %vm172, %v164, -inf
  %174 = vmax.xlane.f32.xlu0 %v173
  %v175 = vpop.xlane.xlu0 %174
  %v176 = vsel %vm172, %v165, -inf
  %177 = vmax.xlane.f32.xlu0 %v176
  %v178 = vpop.xlane.xlu0 %177
  %v179 = vsel %vm172, %v166, -inf
  %180 = vmax.xlane.f32.xlu0 %v179
  %v181 = vpop.xlane.xlu0 %180
  %v182 = vsel %vm172, %v167, -inf
  %183 = vmax.xlane.f32.xlu0 %v182
  %v184 = vpop.xlane.xlu0 %183
  %v185 = vsel %vm172, %v168, -inf
  %186 = vmax.xlane.f32.xlu0 %v185
  %v187 = vpop.xlane.xlu0 %186
  %v188 = vsel %vm172, %v169, -inf
  %189 = vmax.xlane.f32.xlu0 %v188
  %v190 = vpop.xlane.xlu0 %189
  %v191 = vsel %vm172, %v170, -inf
  %192 = vmax.xlane.f32.xlu0 %v191
  %v193 = vpop.xlane.xlu0 %192
  %v194 = vsel %vm172, %v171, -inf
  %195 = vmax.xlane.f32.xlu0 %v194
  %v196 = vpop.xlane.xlu0 %195
  %v197 = vsub.f32 %v164, %v175
  %v198 = vsub.f32 %v165, %v178
  %v199 = vsub.f32 %v166, %v181
  %v200 = vsub.f32 %v167, %v184
  %v201 = vsub.f32 %v168, %v187
  %v202 = vsub.f32 %v169, %v190
  %v203 = vsub.f32 %v170, %v193
  %v204 = vsub.f32 %v171, %v196
  %v205 = vmul.f32 %v197, 1.442695
  %v206 = vpow.pop %v205
  %v207 = vmul.f32 %v198, 1.442695
  %v208 = vpow.pop %v207
  %v209 = vmul.f32 %v199, 1.442695
  %v210 = vpow.pop %v209
  %v211 = vmul.f32 %v200, 1.442695
  %v212 = vpow.pop %v211
  %v213 = vmul.f32 %v201, 1.442695
  %v214 = vpow.pop %v213
  %v215 = vmul.f32 %v202, 1.442695
  %v216 = vpow.pop %v215
  %v217 = vmul.f32 %v203, 1.442695
  %v218 = vpow.pop %v217
  %v219 = vmul.f32 %v204, 1.442695
  %v220 = vpow.pop %v219
  %v221 = vsel %vm172, %v206, 0.0
  %222 = vadd.xlane.f32.xlu0 %v221
  %v223 = vpop.xlane.xlu0 %222
  %v224 = vsel %vm172, %v208, 0.0
  %225 = vadd.xlane.f32.xlu0 %v224
  %v226 = vpop.xlane.xlu0 %225
  %v227 = vsel %vm172, %v210, 0.0
  %228 = vadd.xlane.f32.xlu0 %v227
  %v229 = vpop.xlane.xlu0 %228
  %v230 = vsel %vm172, %v212, 0.0
  %231 = vadd.xlane.f32.xlu0 %v230
  %v232 = vpop.xlane.xlu0 %231
  %v233 = vsel %vm172, %v214, 0.0
  %234 = vadd.xlane.f32.xlu0 %v233
  %v235 = vpop.xlane.xlu0 %234
  %v236 = vsel %vm172, %v216, 0.0
  %237 = vadd.xlane.f32.xlu0 %v236
  %v238 = vpop.xlane.xlu0 %237
  %v239 = vsel %vm172, %v218, 0.0
  %240 = vadd.xlane.f32.xlu0 %v239
  %v241 = vpop.xlane.xlu0 %240
  %v242 = vsel %vm172, %v220, 0.0
  %243 = vadd.xlane.f32.xlu0 %v242
  %v244 = vpop.xlane.xlu0 %243
  %v245 = vrcp.pop %v223
  %v246 = vrcp.pop %v226
  %v247 = vrcp.pop %v229
  %v248 = vrcp.pop %v232
  %v249 = vrcp.pop %v235
  %v250 = vrcp.pop %v238
  %v251 = vrcp.pop %v241
  %v252 = vrcp.pop %v244
  %v253 = vmul.f32 %v206, %v245
  %v254 = vmul.f32 %v208, %v246
  %v255 = vmul.f32 %v210, %v247
  %v256 = vmul.f32 %v212, %v248
  %v257 = vmul.f32 %v214, %v249
  %v258 = vmul.f32 %v216, %v250
  %v259 = vmul.f32 %v218, %v251
  %v260 = vmul.f32 %v220, %v252
  %v261 = vld [vmem:[%s0] sm:$0xff]
  %v262 = vld [vmem:[%s0 + $0x8] sm:$0xff]
  %v263 = vld [vmem:[%s0 + $0x10] sm:$0xff]
  %v264 = vld [vmem:[%s0 + $0x18] sm:$0xff]
  %v265 = vld [vmem:[%s0 + $0x20] sm:$0xff]
  %v266 = vld [vmem:[%s0 + $0x28] sm:$0xff]
  %v267 = vld [vmem:[%s0 + $0x30] sm:$0xff]
  %v268 = vld [vmem:[%s0 + $0x38] sm:$0xff]
  %v269 = vpack.c.bf16 %v254, %v253
  %v270 = vpack.c.bf16 %v256, %v255
  %v271 = vpack.c.bf16 %v258, %v257
  %v272 = vpack.c.bf16 %v260, %v259
  %v273 = vpack.c.bf16 %v262, %v261
  %v274 = vpack.c.bf16 %v264, %v263
  %v275 = vpack.c.bf16 %v266, %v265
  %v276 = vpack.c.bf16 %v268, %v267
  %v278 = vsel %vm172, %v269, 0
  %v281 = vsel %vm172, %v270, 0
  %v284 = vsel %vm172, %v271, 0
  %v287 = vsel %vm172, %v272, 0
  %289 = vmatprep.subr.bf16.mxu0 0
  %290 = vmatpush1.bf16.msra.mxu0 0
  %291 = vmatprep.subr.bf16.mxu0 0
  %292 = vmatpush1.bf16.msra.mxu0 0
  %293 = vmatprep.subr.bf16.mxu0 0
  %294 = vmatpush1.bf16.msra.mxu0 0
  %295 = vmatprep.subr.bf16.mxu0 0
  %296 = vmatpush1.bf16.msra.mxu0 0
  %297 = vmatprep.subr.bf16.mxu0 0
  %298 = vmatpush1.bf16.msra.mxu0 %v276
  %299 = vmatprep.subr.bf16.mxu0 0
  %300 = vmatpush1.bf16.msra.mxu0 %v275
  %301 = vmatprep.subr.bf16.mxu0 0
  %302 = vmatpush1.bf16.msra.mxu0 %v274
  %303 = vmatprep.subr.bf16.mxu0 0
  %304 = vmatpush1.bf16.msra.mxu0 %v273
  %305 = vmatprep.subr.bf16.mxu0 0
  %306 = vmatpush2.bf16.msra.mxu0 0
  %307 = vmatprep.subr.bf16.mxu0 0
  %308 = vmatpush2.bf16.msra.mxu0 0
  %309 = vmatprep.subr.bf16.mxu0 0
  %310 = vmatpush2.bf16.msra.mxu0 0
  %311 = vmatprep.subr.bf16.mxu0 0
  %312 = vmatpush2.bf16.msra.mxu0 0
  %313 = vmatprep.subr.bf16.mxu0 0
  %314 = vmatpush2.bf16.msra.mxu0 0
  %315 = vmatprep.subr.bf16.mxu0 0
  %316 = vmatpush2.bf16.msra.mxu0 0
  %317 = vmatprep.subr.bf16.mxu0 0
  %318 = vmatpush2.bf16.msra.mxu0 0
  %319 = vmatprep.subr.bf16.mxu0 0
  %320 = vmatpush2.bf16.msra.mxu0 0
  %321 = vmatprep.mubr.bf16.mxu0 0
  %322 = vmatmul.mubr.bf16.gmra.mxu0 %v278
  %v323 = vpop.f32.mrf.mxu0
  %v324 = vadd.f32 0.0, %v323
  %v325 = vpop.f32.mrf.mxu0
  %v326 = vpop.f32.mrf.mxu0
  %v327 = vadd.f32 0.0, %v326
  %v328 = vpop.f32.mrf.mxu0
  %329 = vmatprep.mubr.bf16.mxu0 0
  %330 = vmatmul.mubr.bf16.gmra.mxu0 %v281
  %v331 = vpop.f32.mrf.mxu0
  %v332 = vadd.f32 0.0, %v331
  %v333 = vpop.f32.mrf.mxu0
  %v334 = vpop.f32.mrf.mxu0
  %v335 = vadd.f32 0.0, %v334
  %v336 = vpop.f32.mrf.mxu0
  %337 = vmatprep.mubr.bf16.mxu0 0
  %338 = vmatmul.mubr.bf16.gmra.mxu0 %v284
  %v339 = vpop.f32.mrf.mxu0
  %v340 = vadd.f32 0.0, %v339
  %v341 = vpop.f32.mrf.mxu0
  %v342 = vpop.f32.mrf.mxu0
  %v343 = vadd.f32 0.0, %v342
  %v344 = vpop.f32.mrf.mxu0
  %345 = vmatprep.mubr.bf16.mxu0 0
  %346 = vmatmul.mubr.bf16.gmra.mxu0 %v287
  %v347 = vpop.f32.mrf.mxu0
  %v348 = vadd.f32 0.0, %v347
  %v349 = vpop.f32.mrf.mxu0
  %v350 = vpop.f32.mrf.mxu0
  %v351 = vadd.f32 0.0, %v350
  %v352 = vpop.f32.mrf.mxu0
  %353 = vdwg.mxu0
  %354 = vrot.lane.b32.xlu0 %v48, 127
  %v355 = vpop.permute.xlu0 %354
  %356 = vrot.lane.b32.xlu0 %v49, 127
  %v357 = vpop.permute.xlu0 %356
  %358 = vrot.lane.b32.xlu0 %v50, 127
  %v359 = vpop.permute.xlu0 %358
  %360 = vrot.lane.b32.xlu0 %v51, 127
  %v361 = vpop.permute.xlu0 %360
  %362 = vrot.lane.b32.xlu0 %v52, 127
  %v363 = vpop.permute.xlu0 %362
  %364 = vrot.lane.b32.xlu0 %v53, 127
  %v365 = vpop.permute.xlu0 %364
  %366 = vrot.lane.b32.xlu0 %v54, 127
  %v367 = vpop.permute.xlu0 %366
  %368 = vrot.lane.b32.xlu0 %v55, 127
  %v369 = vpop.permute.xlu0 %368
  %378 = vxpose.xlu0.b32.start [1/16] %v355, 128
  %379 = vxpose.xlu0.b32.cont [2/16] %v357, 128
  %380 = vxpose.xlu0.b32.cont [3/16] %v359, 128
  %381 = vxpose.xlu0.b32.cont [4/16] %v361, 128
  %382 = vxpose.xlu0.b32.cont [5/16] %v363, 128
  %383 = vxpose.xlu0.b32.cont [6/16] %v365, 128
  %384 = vxpose.xlu0.b32.cont [7/16] %v367, 128
  %385 = vxpose.xlu0.b32.cont [8/16] %v369, 128
  %386 = vxpose.xlu0.b32.cont [9/16] 0.0, 128
  %387 = vxpose.xlu0.b32.cont [10/16] 0.0, 128
  %388 = vxpose.xlu0.b32.cont [11/16] 0.0, 128
  %389 = vxpose.xlu0.b32.cont [12/16] 0.0, 128
  %390 = vxpose.xlu0.b32.cont [13/16] 0.0, 128
  %391 = vxpose.xlu0.b32.cont [14/16] 0.0, 128
  %392 = vxpose.xlu0.b32.cont [15/16] 0.0, 128
  %393 = vxpose.xlu0.b32.end [16/16] 0.0, 128
  %v394 = vpop.trf.xlu0
  %v395 = vpop.trf.xlu0
  %v396 = vpop.trf.xlu0
  %v397 = vpop.trf.xlu0
  %v398 = vpop.trf.xlu0
  %v399 = vpop.trf.xlu0
  %v400 = vpop.trf.xlu0
  %v401 = vpop.trf.xlu0
  %v402 = vpop.trf.xlu0
  %v403 = vpop.trf.xlu0
  %v404 = vpop.trf.xlu0
  %v405 = vpop.trf.xlu0
  %v406 = vpop.trf.xlu0
  %v407 = vpop.trf.xlu0
  %v408 = vpop.trf.xlu0
  %v409 = vpop.trf.xlu0
  %410 = vset.pattern.permute.xlu0 3
  %411 = vperm.xlu0 %410, %v48
  %v412 = vpop.permute.xlu0 %411
  %414 = vset.pattern.permute.xlu0 3
  %415 = vperm.xlu0 %414, %v49
  %v416 = vpop.permute.xlu0 %415
  %418 = vset.pattern.permute.xlu0 3
  %419 = vperm.xlu0 %418, %v50
  %v420 = vpop.permute.xlu0 %419
  %422 = vset.pattern.permute.xlu0 3
  %423 = vperm.xlu0 %422, %v51
  %v424 = vpop.permute.xlu0 %423
  %426 = vset.pattern.permute.xlu0 3
  %427 = vperm.xlu0 %426, %v52
  %v428 = vpop.permute.xlu0 %427
  %430 = vset.pattern.permute.xlu0 3
  %431 = vperm.xlu0 %430, %v53
  %v432 = vpop.permute.xlu0 %431
  %434 = vset.pattern.permute.xlu0 3
  %435 = vperm.xlu0 %434, %v54
  %v436 = vpop.permute.xlu0 %435
  %438 = vset.pattern.permute.xlu0 3
  %439 = vperm.xlu0 %438, %v55
  %v440 = vpop.permute.xlu0 %439
  %v442 = vlaneseq
  %v443 = vshrl.u32 %v442, 7
  %v444 = vsub.s32 0, %v443
  %v445 = vrot.slane %v394, %v444
  %v446 = vadd.f32 %v412, %v445
  %v447 = vadd.f32 %v416, %v445
  %v448 = vadd.f32 %v420, %v445
  %v449 = vadd.f32 %v424, %v445
  %v450 = vadd.f32 %v428, %v445
  %v451 = vadd.f32 %v432, %v445
  %v452 = vadd.f32 %v436, %v445
  %v453 = vadd.f32 %v440, %v445
  %vm454 = vcmp.gt.f32.partialorder %v446, 0.0
  %vm455 = vcmp.gt.f32.partialorder %v447, 0.0
  %vm456 = vcmp.gt.f32.partialorder %v448, 0.0
  %vm457 = vcmp.gt.f32.partialorder %v449, 0.0
  %vm458 = vcmp.gt.f32.partialorder %v450, 0.0
  %vm459 = vcmp.gt.f32.partialorder %v451, 0.0
  %vm460 = vcmp.gt.f32.partialorder %v452, 0.0
  %vm461 = vcmp.gt.f32.partialorder %v453, 0.0
  %v462 = vmul.f32 %v446, 0.2
  %v463 = vmul.f32 %v447, 0.2
  %v464 = vmul.f32 %v448, 0.2
  %v465 = vmul.f32 %v449, 0.2
  %v466 = vmul.f32 %v450, 0.2
  %v467 = vmul.f32 %v451, 0.2
  %v468 = vmul.f32 %v452, 0.2
  %v469 = vmul.f32 %v453, 0.2
  %v470 = vsel %vm454, %v446, %v462
  %v471 = vsel %vm455, %v447, %v463
  %v472 = vsel %vm456, %v448, %v464
  %v473 = vsel %vm457, %v449, %v465
  %v474 = vsel %vm458, %v450, %v466
  %v475 = vsel %vm459, %v451, %v467
  %v476 = vsel %vm460, %v452, %v468
  %v477 = vsel %vm461, %v453, %v469
  %v478 = vadd.f32 %v470, %v40
  %v479 = vadd.f32 %v471, %v41
  %v480 = vadd.f32 %v472, %v42
  %v481 = vadd.f32 %v473, %v43
  %v482 = vadd.f32 %v474, %v44
  %v483 = vadd.f32 %v475, %v45
  %v484 = vadd.f32 %v476, %v46
  %v485 = vadd.f32 %v477, %v47
  %v486 = vsel %vm172, %v478, -inf
  %487 = vmax.xlane.f32.xlu0 %v486
  %v488 = vpop.xlane.xlu0 %487
  %v489 = vsel %vm172, %v479, -inf
  %490 = vmax.xlane.f32.xlu0 %v489
  %v491 = vpop.xlane.xlu0 %490
  %v492 = vsel %vm172, %v480, -inf
  %493 = vmax.xlane.f32.xlu0 %v492
  %v494 = vpop.xlane.xlu0 %493
  %v495 = vsel %vm172, %v481, -inf
  %496 = vmax.xlane.f32.xlu0 %v495
  %v497 = vpop.xlane.xlu0 %496
  %v498 = vsel %vm172, %v482, -inf
  %499 = vmax.xlane.f32.xlu0 %v498
  %v500 = vpop.xlane.xlu0 %499
  %v501 = vsel %vm172, %v483, -inf
  %502 = vmax.xlane.f32.xlu0 %v501
  %v503 = vpop.xlane.xlu0 %502
  %v504 = vsel %vm172, %v484, -inf
  %505 = vmax.xlane.f32.xlu0 %v504
  %v506 = vpop.xlane.xlu0 %505
  %v507 = vsel %vm172, %v485, -inf
  %508 = vmax.xlane.f32.xlu0 %v507
  %v509 = vpop.xlane.xlu0 %508
  %v510 = vsub.f32 %v478, %v488
  %v511 = vsub.f32 %v479, %v491
  %v512 = vsub.f32 %v480, %v494
  %v513 = vsub.f32 %v481, %v497
  %v514 = vsub.f32 %v482, %v500
  %v515 = vsub.f32 %v483, %v503
  %v516 = vsub.f32 %v484, %v506
  %v517 = vsub.f32 %v485, %v509
  %v518 = vmul.f32 %v510, 1.442695
  %v519 = vpow.pop %v518
  %v520 = vmul.f32 %v511, 1.442695
  %v521 = vpow.pop %v520
  %v522 = vmul.f32 %v512, 1.442695
  %v523 = vpow.pop %v522
  %v524 = vmul.f32 %v513, 1.442695
  %v525 = vpow.pop %v524
  %v526 = vmul.f32 %v514, 1.442695
  %v527 = vpow.pop %v526
  %v528 = vmul.f32 %v515, 1.442695
  %v529 = vpow.pop %v528
  %v530 = vmul.f32 %v516, 1.442695
  %v531 = vpow.pop %v530
  %v532 = vmul.f32 %v517, 1.442695
  %v533 = vpow.pop %v532
  %v534 = vsel %vm172, %v519, 0.0
  %535 = vadd.xlane.f32.xlu0 %v534
  %v536 = vpop.xlane.xlu0 %535
  %v537 = vsel %vm172, %v521, 0.0
  %538 = vadd.xlane.f32.xlu0 %v537
  %v539 = vpop.xlane.xlu0 %538
  %v540 = vsel %vm172, %v523, 0.0
  %541 = vadd.xlane.f32.xlu0 %v540
  %v542 = vpop.xlane.xlu0 %541
  %v543 = vsel %vm172, %v525, 0.0
  %544 = vadd.xlane.f32.xlu0 %v543
  %v545 = vpop.xlane.xlu0 %544
  %v546 = vsel %vm172, %v527, 0.0
  %547 = vadd.xlane.f32.xlu0 %v546
  %v548 = vpop.xlane.xlu0 %547
  %v549 = vsel %vm172, %v529, 0.0
  %550 = vadd.xlane.f32.xlu0 %v549
  %v551 = vpop.xlane.xlu0 %550
  %v552 = vsel %vm172, %v531, 0.0
  %553 = vadd.xlane.f32.xlu0 %v552
  %v554 = vpop.xlane.xlu0 %553
  %v555 = vsel %vm172, %v533, 0.0
  %556 = vadd.xlane.f32.xlu0 %v555
  %v557 = vpop.xlane.xlu0 %556
  %v558 = vrcp.pop %v536
  %v559 = vrcp.pop %v539
  %v560 = vrcp.pop %v542
  %v561 = vrcp.pop %v545
  %v562 = vrcp.pop %v548
  %v563 = vrcp.pop %v551
  %v564 = vrcp.pop %v554
  %v565 = vrcp.pop %v557
  %v566 = vmul.f32 %v519, %v558
  %v567 = vmul.f32 %v521, %v559
  %v568 = vmul.f32 %v523, %v560
  %v569 = vmul.f32 %v525, %v561
  %v570 = vmul.f32 %v527, %v562
  %v571 = vmul.f32 %v529, %v563
  %v572 = vmul.f32 %v531, %v564
  %v573 = vmul.f32 %v533, %v565
  %v574 = vpack.c.bf16 %v567, %v566
  %v575 = vpack.c.bf16 %v569, %v568
  %v576 = vpack.c.bf16 %v571, %v570
  %v577 = vpack.c.bf16 %v573, %v572
  %582 = vrot.lane.b32.xlu0 %v273, 96
  %v583 = vpop.permute.xlu0 %582
  %584 = vrot.lane.b32.xlu0 %v274, 96
  %v585 = vpop.permute.xlu0 %584
  %586 = vrot.lane.b32.xlu0 %v275, 96
  %v587 = vpop.permute.xlu0 %586
  %588 = vrot.lane.b32.xlu0 %v276, 96
  %v589 = vpop.permute.xlu0 %588
  %v595 = vsel %vm172, %v574, 0
  %v598 = vsel %vm172, %v575, 0
  %v601 = vsel %vm172, %v576, 0
  %v604 = vsel %vm172, %v577, 0
  %606 = vmatprep.subr.bf16.mxu0 0
  %607 = vmatpush1.bf16.msra.mxu0 0
  %608 = vmatprep.subr.bf16.mxu0 0
  %609 = vmatpush1.bf16.msra.mxu0 0
  %610 = vmatprep.subr.bf16.mxu0 0
  %611 = vmatpush1.bf16.msra.mxu0 0
  %612 = vmatprep.subr.bf16.mxu0 0
  %613 = vmatpush1.bf16.msra.mxu0 0
  %614 = vmatprep.subr.bf16.mxu0 0
  %615 = vmatpush1.bf16.msra.mxu0 %v589
  %616 = vmatprep.subr.bf16.mxu0 0
  %617 = vmatpush1.bf16.msra.mxu0 %v587
  %618 = vmatprep.subr.bf16.mxu0 0
  %619 = vmatpush1.bf16.msra.mxu0 %v585
  %620 = vmatprep.subr.bf16.mxu0 0
  %621 = vmatpush1.bf16.msra.mxu0 %v583
  %622 = vmatprep.subr.bf16.mxu0 0
  %623 = vmatpush2.bf16.msra.mxu0 0
  %624 = vmatprep.subr.bf16.mxu0 0
  %625 = vmatpush2.bf16.msra.mxu0 0
  %626 = vmatprep.subr.bf16.mxu0 0
  %627 = vmatpush2.bf16.msra.mxu0 0
  %628 = vmatprep.subr.bf16.mxu0 0
  %629 = vmatpush2.bf16.msra.mxu0 0
  %630 = vmatprep.subr.bf16.mxu0 0
  %631 = vmatpush2.bf16.msra.mxu0 0
  %632 = vmatprep.subr.bf16.mxu0 0
  %633 = vmatpush2.bf16.msra.mxu0 0
  %634 = vmatprep.subr.bf16.mxu0 0
  %635 = vmatpush2.bf16.msra.mxu0 0
  %636 = vmatprep.subr.bf16.mxu0 0
  %637 = vmatpush2.bf16.msra.mxu0 0
  %638 = vmatprep.mubr.bf16.mxu0 0
  %639 = vmatmul.mubr.bf16.gmra.mxu0 %v595
  %v640 = vpop.f32.mrf.mxu0
  %v641 = vadd.f32 0.0, %v640
  %v642 = vpop.f32.mrf.mxu0
  %v643 = vpop.f32.mrf.mxu0
  %v644 = vadd.f32 0.0, %v643
  %v645 = vpop.f32.mrf.mxu0
  %646 = vmatprep.mubr.bf16.mxu0 0
  %647 = vmatmul.mubr.bf16.gmra.mxu0 %v598
  %v648 = vpop.f32.mrf.mxu0
  %v649 = vadd.f32 0.0, %v648
  %v650 = vpop.f32.mrf.mxu0
  %v651 = vpop.f32.mrf.mxu0
  %v652 = vadd.f32 0.0, %v651
  %v653 = vpop.f32.mrf.mxu0
  %654 = vmatprep.mubr.bf16.mxu0 0
  %655 = vmatmul.mubr.bf16.gmra.mxu0 %v601
  %v656 = vpop.f32.mrf.mxu0
  %v657 = vadd.f32 0.0, %v656
  %v658 = vpop.f32.mrf.mxu0
  %v659 = vpop.f32.mrf.mxu0
  %v660 = vadd.f32 0.0, %v659
  %v661 = vpop.f32.mrf.mxu0
  %662 = vmatprep.mubr.bf16.mxu0 0
  %663 = vmatmul.mubr.bf16.gmra.mxu0 %v604
  %v664 = vpop.f32.mrf.mxu0
  %v665 = vadd.f32 0.0, %v664
  %v666 = vpop.f32.mrf.mxu0
  %v667 = vpop.f32.mrf.mxu0
  %v668 = vadd.f32 0.0, %v667
  %v669 = vpop.f32.mrf.mxu0
  %670 = vdwg.mxu0
  %679 = vrot.lane.b32.xlu0 %v641, 32
  %v680 = vpop.permute.xlu0 %679
  %681 = vrot.lane.b32.xlu0 %v644, 32
  %v682 = vpop.permute.xlu0 %681
  %683 = vrot.lane.b32.xlu0 %v649, 32
  %v684 = vpop.permute.xlu0 %683
  %685 = vrot.lane.b32.xlu0 %v652, 32
  %v686 = vpop.permute.xlu0 %685
  %687 = vrot.lane.b32.xlu0 %v657, 32
  %v688 = vpop.permute.xlu0 %687
  %689 = vrot.lane.b32.xlu0 %v660, 32
  %v690 = vpop.permute.xlu0 %689
  %691 = vrot.lane.b32.xlu0 %v665, 32
  %v692 = vpop.permute.xlu0 %691
  %693 = vrot.lane.b32.xlu0 %v668, 32
  %v694 = vpop.permute.xlu0 %693
  %vm703 = vcmask 261120
  %v704 = vsel %vm703, %v324, %v680
  %v705 = vsel %vm703, %v327, %v682
  %v706 = vsel %vm703, %v332, %v684
  %v707 = vsel %vm703, %v335, %v686
  %v708 = vsel %vm703, %v340, %v688
  %v709 = vsel %vm703, %v343, %v690
  %v710 = vsel %vm703, %v348, %v692
  %v711 = vsel %vm703, %v351, %v694
  %v712 = vsel %vm172, %v704, 0.0
  %v713 = vsel %vm172, %v705, 0.0
  %v714 = vsel %vm172, %v706, 0.0
  %v715 = vsel %vm172, %v707, 0.0
  %v716 = vsel %vm172, %v708, 0.0
  %v717 = vsel %vm172, %v709, 0.0
  %v718 = vsel %vm172, %v710, 0.0
  %v719 = vsel %vm172, %v711, 0.0
  %v720 = vld [vmem:[%s3] sm:$0x1]
  %v722 = vlaneseq
  %v723 = vshrl.u32 %v722, 7
  %v724 = vsub.s32 0, %v723
  %v725 = vrot.slane %v720, %v724
  %v727 = vadd.f32 %v712, %v725
  %v728 = vadd.f32 %v713, %v725
  %v729 = vadd.f32 %v714, %v725
  %v730 = vadd.f32 %v715, %v725
  %v731 = vadd.f32 %v716, %v725
  %v732 = vadd.f32 %v717, %v725
  %v733 = vadd.f32 %v718, %v725
  %v734 = vadd.f32 %v719, %v725
  %vm735 = vcmp.gt.f32.partialorder %v727, 0.0
  %vm736 = vcmp.gt.f32.partialorder %v728, 0.0
  %vm737 = vcmp.gt.f32.partialorder %v729, 0.0
  %vm738 = vcmp.gt.f32.partialorder %v730, 0.0
  %vm739 = vcmp.gt.f32.partialorder %v731, 0.0
  %vm740 = vcmp.gt.f32.partialorder %v732, 0.0
  %vm741 = vcmp.gt.f32.partialorder %v733, 0.0
  %vm742 = vcmp.gt.f32.partialorder %v734, 0.0
  %v743 = vmul.f32 %v727, 0.01
  %v744 = vmul.f32 %v728, 0.01
  %v745 = vmul.f32 %v729, 0.01
  %v746 = vmul.f32 %v730, 0.01
  %v747 = vmul.f32 %v731, 0.01
  %v748 = vmul.f32 %v732, 0.01
  %v749 = vmul.f32 %v733, 0.01
  %v750 = vmul.f32 %v734, 0.01
  %v751 = vsel %vm735, %v727, %v743
  %v752 = vsel %vm736, %v728, %v744
  %v753 = vsel %vm737, %v729, %v745
  %v754 = vsel %vm738, %v730, %v746
  %v755 = vsel %vm739, %v731, %v747
  %v756 = vsel %vm740, %v732, %v748
  %v757 = vsel %vm741, %v733, %v749
  %v758 = vsel %vm742, %v734, %v750
  %v759 = vadd.f32 %v751, %v752
  %v760 = vadd.f32 %v759, %v753
  %v761 = vadd.f32 %v760, %v754
  %v762 = vadd.f32 %v761, %v755
  %v763 = vadd.f32 %v762, %v756
  %v764 = vadd.f32 %v763, %v757
  %v765 = vadd.f32 %v764, %v758
  %v766 = vrot.slane %v765, 4
  %v767 = vadd.f32 %v765, %v766
  %v768 = vrot.slane %v767, 2
  %v769 = vadd.f32 %v767, %v768
  %v770 = vrot.slane %v769, 1
  %v771 = vadd.f32 %v769, %v770
  %v772 = vrcp.pop 64.0
  %v773 = vmul.f32 %v771, %v772
  %v774 = vmul.f32 %v751, %v751
  %v775 = vmul.f32 %v752, %v752
  %v776 = vmul.f32 %v753, %v753
  %v777 = vmul.f32 %v754, %v754
  %v778 = vmul.f32 %v755, %v755
  %v779 = vmul.f32 %v756, %v756
  %v780 = vmul.f32 %v757, %v757
  %v781 = vmul.f32 %v758, %v758
  %v782 = vadd.f32 %v774, %v775
  %v783 = vadd.f32 %v782, %v776
  %v784 = vadd.f32 %v783, %v777
  %v785 = vadd.f32 %v784, %v778
  %v786 = vadd.f32 %v785, %v779
  %v787 = vadd.f32 %v786, %v780
  %v788 = vadd.f32 %v787, %v781
  %v789 = vrot.slane %v788, 4
  %v790 = vadd.f32 %v788, %v789
  %v791 = vrot.slane %v790, 2
  %v792 = vadd.f32 %v790, %v791
  %v793 = vrot.slane %v792, 1
  %v794 = vadd.f32 %v792, %v793
  %v795 = vmul.f32 %v794, %v772
  %v796 = vmul.f32 %v773, %v773
  %v797 = vsub.f32 %v795, %v796
  %v798 = vld [vmem:[%s4] sm:$0x1]
  %v799 = vsub.f32 %v751, %v773
  %v800 = vsub.f32 %v752, %v773
  %v801 = vsub.f32 %v753, %v773
  %v802 = vsub.f32 %v754, %v773
  %v803 = vsub.f32 %v755, %v773
  %v804 = vsub.f32 %v756, %v773
  %v805 = vsub.f32 %v757, %v773
  %v806 = vsub.f32 %v758, %v773
  %v808 = vlaneseq
  %v809 = vshrl.u32 %v808, 7
  %v810 = vsub.s32 0, %v809
  %v811 = vrot.slane %v798, %v810
  %v813 = vmul.f32 %v811, %v799
  %v814 = vmul.f32 %v811, %v800
  %v815 = vmul.f32 %v811, %v801
  %v816 = vmul.f32 %v811, %v802
  %v817 = vmul.f32 %v811, %v803
  %v818 = vmul.f32 %v811, %v804
  %v819 = vmul.f32 %v811, %v805
  %v820 = vmul.f32 %v811, %v806
  %v821 = vadd.f32 %v797, 1e-05
  %v822 = vrsqrt.pop %v821
  %v823 = vmul.f32 %v813, %v822
  %v824 = vmul.f32 %v814, %v822
  %v825 = vmul.f32 %v815, %v822
  %v826 = vmul.f32 %v816, %v822
  %v827 = vmul.f32 %v817, %v822
  %v828 = vmul.f32 %v818, %v822
  %v829 = vmul.f32 %v819, %v822
  %v830 = vmul.f32 %v820, %v822
  %v831 = vld [vmem:[%s5] sm:$0x1]
  %v833 = vlaneseq
  %v834 = vshrl.u32 %v833, 7
  %v835 = vsub.s32 0, %v834
  %v836 = vrot.slane %v831, %v835
  %v838 = vadd.f32 %v823, %v836
  %v839 = vadd.f32 %v824, %v836
  %v840 = vadd.f32 %v825, %v836
  %v841 = vadd.f32 %v826, %v836
  %v842 = vadd.f32 %v827, %v836
  %v843 = vadd.f32 %v828, %v836
  %v844 = vadd.f32 %v829, %v836
  %v845 = vadd.f32 %v830, %v836
  %v846 = vpack.c.bf16 %v839, %v838
  %v847 = vpack.c.bf16 %v841, %v840
  %v848 = vpack.c.bf16 %v843, %v842
  %v849 = vpack.c.bf16 %v845, %v844
  %v850 = vld [vmem:[%s6] sm:$0xf]
  %v851 = vld [vmem:[%s6 + $0x4] sm:$0xf]
  %v852 = vld [vmem:[%s6 + $0x8] sm:$0xf]
  %v853 = vld [vmem:[%s6 + $0xc] sm:$0xf]
  %v854 = vld [vmem:[%s6 + $0x10] sm:$0xf]
  %v855 = vld [vmem:[%s6 + $0x14] sm:$0xf]
  %v856 = vld [vmem:[%s6 + $0x18] sm:$0xf]
  %v857 = vld [vmem:[%s6 + $0x1c] sm:$0xf]
  %v858 = vld [vmem:[%s6 + $0x20] sm:$0xf]
  %v859 = vld [vmem:[%s6 + $0x24] sm:$0xf]
  %v860 = vld [vmem:[%s6 + $0x28] sm:$0xf]
  %v861 = vld [vmem:[%s6 + $0x2c] sm:$0xf]
  %v862 = vld [vmem:[%s6 + $0x30] sm:$0xf]
  %v863 = vld [vmem:[%s6 + $0x34] sm:$0xf]
  %v864 = vld [vmem:[%s6 + $0x38] sm:$0xf]
  %v865 = vld [vmem:[%s6 + $0x3c] sm:$0xf]
  %v882 = vunpack.c.l.b16 %v850
  %v883 = vunpack.c.l.b16 %v851
  %v884 = vunpack.c.l.b16 %v852
  %v885 = vunpack.c.l.b16 %v853
  %v886 = vunpack.c.l.b16 %v854
  %v887 = vunpack.c.l.b16 %v855
  %v888 = vunpack.c.l.b16 %v856
  %v889 = vunpack.c.l.b16 %v857
  %v890 = vunpack.c.l.b16 %v858
  %v891 = vunpack.c.l.b16 %v859
  %v892 = vunpack.c.l.b16 %v860
  %v893 = vunpack.c.l.b16 %v861
  %v894 = vunpack.c.l.b16 %v862
  %v895 = vunpack.c.l.b16 %v863
  %v896 = vunpack.c.l.b16 %v864
  %v897 = vunpack.c.l.b16 %v865
  %v898 = vpack.c.b16 %v883, %v882
  %v899 = vpack.c.b16 %v885, %v884
  %v900 = vpack.c.b16 %v887, %v886
  %v901 = vpack.c.b16 %v889, %v888
  %v902 = vpack.c.b16 %v891, %v890
  %v903 = vpack.c.b16 %v893, %v892
  %v904 = vpack.c.b16 %v895, %v894
  %v905 = vpack.c.b16 %v897, %v896
  %914 = vmatprep.subr.bf16.mxu0 0
  %915 = vmatpush1.bf16.msra.mxu0 %v905
  %916 = vmatprep.subr.bf16.mxu0 0
  %917 = vmatpush1.bf16.msra.mxu0 %v904
  %918 = vmatprep.subr.bf16.mxu0 0
  %919 = vmatpush1.bf16.msra.mxu0 %v903
  %920 = vmatprep.subr.bf16.mxu0 0
  %921 = vmatpush1.bf16.msra.mxu0 %v902
  %922 = vmatprep.subr.bf16.mxu0 0
  %923 = vmatpush1.bf16.msra.mxu0 %v901
  %924 = vmatprep.subr.bf16.mxu0 0
  %925 = vmatpush1.bf16.msra.mxu0 %v900
  %926 = vmatprep.subr.bf16.mxu0 0
  %927 = vmatpush1.bf16.msra.mxu0 %v899
  %928 = vmatprep.subr.bf16.mxu0 0
  %929 = vmatpush1.bf16.msra.mxu0 %v898
  %930 = vmatprep.subr.bf16.mxu0 0
  %931 = vmatpush2.bf16.msra.mxu0 0
  %932 = vmatprep.subr.bf16.mxu0 0
  %933 = vmatpush2.bf16.msra.mxu0 0
  %934 = vmatprep.subr.bf16.mxu0 0
  %935 = vmatpush2.bf16.msra.mxu0 0
  %936 = vmatprep.subr.bf16.mxu0 0
  %937 = vmatpush2.bf16.msra.mxu0 0
  %938 = vmatprep.subr.bf16.mxu0 0
  %939 = vmatpush2.bf16.msra.mxu0 0
  %940 = vmatprep.subr.bf16.mxu0 0
  %941 = vmatpush2.bf16.msra.mxu0 0
  %942 = vmatprep.subr.bf16.mxu0 0
  %943 = vmatpush2.bf16.msra.mxu0 0
  %944 = vmatprep.subr.bf16.mxu0 0
  %945 = vmatpush2.bf16.msra.mxu0 0
  %946 = vmatprep.mubr.bf16.mxu0 0
  %947 = vmatmul.mubr.bf16.gmra.mxu0 %v846
  %v948 = vpop.f32.mrf.mxu0
  %v949 = vadd.f32 0.0, %v948
  %v950 = vpop.f32.mrf.mxu0
  %v951 = vpop.f32.mrf.mxu0
  %v952 = vadd.f32 0.0, %v951
  %v953 = vpop.f32.mrf.mxu0
  %954 = vmatprep.mubr.bf16.mxu0 0
  %955 = vmatmul.mubr.bf16.gmra.mxu0 %v847
  %v956 = vpop.f32.mrf.mxu0
  %v957 = vadd.f32 0.0, %v956
  %v958 = vpop.f32.mrf.mxu0
  %v959 = vpop.f32.mrf.mxu0
  %v960 = vadd.f32 0.0, %v959
  %v961 = vpop.f32.mrf.mxu0
  %962 = vmatprep.mubr.bf16.mxu0 0
  %963 = vmatmul.mubr.bf16.gmra.mxu0 %v848
  %v964 = vpop.f32.mrf.mxu0
  %v965 = vadd.f32 0.0, %v964
  %v966 = vpop.f32.mrf.mxu0
  %v967 = vpop.f32.mrf.mxu0
  %v968 = vadd.f32 0.0, %v967
  %v969 = vpop.f32.mrf.mxu0
  %970 = vmatprep.mubr.bf16.mxu0 0
  %971 = vmatmul.mubr.bf16.gmra.mxu0 %v849
  %v972 = vpop.f32.mrf.mxu0
  %v973 = vadd.f32 0.0, %v972
  %v974 = vpop.f32.mrf.mxu0
  %v975 = vpop.f32.mrf.mxu0
  %v976 = vadd.f32 0.0, %v975
  %v977 = vpop.f32.mrf.mxu0
  %978 = vdwg.mxu0
  %979 = vst [vmem:[%s8] sm:$0xff] %v949
  %980 = vst [vmem:[%s8 + $0x8] sm:$0xff] %v952
  %981 = vst [vmem:[%s8 + $0x10] sm:$0xff] %v957
  %982 = vst [vmem:[%s8 + $0x18] sm:$0xff] %v960
  %983 = vst [vmem:[%s8 + $0x20] sm:$0xff] %v965
  %984 = vst [vmem:[%s8 + $0x28] sm:$0xff] %v968
  %985 = vst [vmem:[%s8 + $0x30] sm:$0xff] %v973
  %986 = vst [vmem:[%s8 + $0x38] sm:$0xff] %v976
  %v987 = vpack.c.bf16 %v952, %v949
  %v988 = vpack.c.bf16 %v960, %v957
  %v989 = vpack.c.bf16 %v968, %v965
  %v990 = vpack.c.bf16 %v976, %v973
  %v991 = vld [vmem:[%s7] sm:$0xf]
  %v992 = vld [vmem:[%s7 + $0x4] sm:$0xf]
  %v993 = vld [vmem:[%s7 + $0x8] sm:$0xf]
  %v994 = vld [vmem:[%s7 + $0xc] sm:$0xf]
  %v995 = vld [vmem:[%s7 + $0x10] sm:$0xf]
  %v996 = vld [vmem:[%s7 + $0x14] sm:$0xf]
  %v997 = vld [vmem:[%s7 + $0x18] sm:$0xf]
  %v998 = vld [vmem:[%s7 + $0x1c] sm:$0xf]
  %v999 = vld [vmem:[%s7 + $0x20] sm:$0xf]
  %v1000 = vld [vmem:[%s7 + $0x24] sm:$0xf]
  %v1001 = vld [vmem:[%s7 + $0x28] sm:$0xf]
  %v1002 = vld [vmem:[%s7 + $0x2c] sm:$0xf]
  %v1003 = vld [vmem:[%s7 + $0x30] sm:$0xf]
  %v1004 = vld [vmem:[%s7 + $0x34] sm:$0xf]
  %v1005 = vld [vmem:[%s7 + $0x38] sm:$0xf]
  %v1006 = vld [vmem:[%s7 + $0x3c] sm:$0xf]
  %v1023 = vunpack.c.l.b16 %v991
  %v1024 = vunpack.c.l.b16 %v992
  %v1025 = vunpack.c.l.b16 %v993
  %v1026 = vunpack.c.l.b16 %v994
  %v1027 = vunpack.c.l.b16 %v995
  %v1028 = vunpack.c.l.b16 %v996
  %v1029 = vunpack.c.l.b16 %v997
  %v1030 = vunpack.c.l.b16 %v998
  %v1031 = vunpack.c.l.b16 %v999
  %v1032 = vunpack.c.l.b16 %v1000
  %v1033 = vunpack.c.l.b16 %v1001
  %v1034 = vunpack.c.l.b16 %v1002
  %v1035 = vunpack.c.l.b16 %v1003
  %v1036 = vunpack.c.l.b16 %v1004
  %v1037 = vunpack.c.l.b16 %v1005
  %v1038 = vunpack.c.l.b16 %v1006
  %v1039 = vpack.c.b16 %v1024, %v1023
  %v1040 = vpack.c.b16 %v1026, %v1025
  %v1041 = vpack.c.b16 %v1028, %v1027
  %v1042 = vpack.c.b16 %v1030, %v1029
  %v1043 = vpack.c.b16 %v1032, %v1031
  %v1044 = vpack.c.b16 %v1034, %v1033
  %v1045 = vpack.c.b16 %v1036, %v1035
  %v1046 = vpack.c.b16 %v1038, %v1037
  %1055 = vmatprep.subr.bf16.mxu0 0
  %1056 = vmatpush1.bf16.msra.mxu0 %v1046
  %1057 = vmatprep.subr.bf16.mxu0 0
  %1058 = vmatpush1.bf16.msra.mxu0 %v1045
  %1059 = vmatprep.subr.bf16.mxu0 0
  %1060 = vmatpush1.bf16.msra.mxu0 %v1044
  %1061 = vmatprep.subr.bf16.mxu0 0
  %1062 = vmatpush1.bf16.msra.mxu0 %v1043
  %1063 = vmatprep.subr.bf16.mxu0 0
  %1064 = vmatpush1.bf16.msra.mxu0 %v1042
  %1065 = vmatprep.subr.bf16.mxu0 0
  %1066 = vmatpush1.bf16.msra.mxu0 %v1041
  %1067 = vmatprep.subr.bf16.mxu0 0
  %1068 = vmatpush1.bf16.msra.mxu0 %v1040
  %1069 = vmatprep.subr.bf16.mxu0 0
  %1070 = vmatpush1.bf16.msra.mxu0 %v1039
  %1071 = vmatprep.subr.bf16.mxu0 0
  %1072 = vmatpush2.bf16.msra.mxu0 0
  %1073 = vmatprep.subr.bf16.mxu0 0
  %1074 = vmatpush2.bf16.msra.mxu0 0
  %1075 = vmatprep.subr.bf16.mxu0 0
  %1076 = vmatpush2.bf16.msra.mxu0 0
  %1077 = vmatprep.subr.bf16.mxu0 0
  %1078 = vmatpush2.bf16.msra.mxu0 0
  %1079 = vmatprep.subr.bf16.mxu0 0
  %1080 = vmatpush2.bf16.msra.mxu0 0
  %1081 = vmatprep.subr.bf16.mxu0 0
  %1082 = vmatpush2.bf16.msra.mxu0 0
  %1083 = vmatprep.subr.bf16.mxu0 0
  %1084 = vmatpush2.bf16.msra.mxu0 0
  %1085 = vmatprep.subr.bf16.mxu0 0
  %1086 = vmatpush2.bf16.msra.mxu0 0
  %1087 = vmatprep.mubr.bf16.mxu0 0
  %1088 = vmatmul.mubr.bf16.gmra.mxu0 %v987
  %v1089 = vpop.f32.mrf.mxu0
  %v1090 = vadd.f32 0.0, %v1089
  %v1091 = vpop.f32.mrf.mxu0
  %v1092 = vpop.f32.mrf.mxu0
  %v1093 = vadd.f32 0.0, %v1092
  %v1094 = vpop.f32.mrf.mxu0
  %1095 = vmatprep.mubr.bf16.mxu0 0
  %1096 = vmatmul.mubr.bf16.gmra.mxu0 %v988
  %v1097 = vpop.f32.mrf.mxu0
  %v1098 = vadd.f32 0.0, %v1097
  %v1099 = vpop.f32.mrf.mxu0
  %v1100 = vpop.f32.mrf.mxu0
  %v1101 = vadd.f32 0.0, %v1100
  %v1102 = vpop.f32.mrf.mxu0
  %1103 = vmatprep.mubr.bf16.mxu0 0
  %1104 = vmatmul.mubr.bf16.gmra.mxu0 %v989
  %v1105 = vpop.f32.mrf.mxu0
  %v1106 = vadd.f32 0.0, %v1105
  %v1107 = vpop.f32.mrf.mxu0
  %v1108 = vpop.f32.mrf.mxu0
  %v1109 = vadd.f32 0.0, %v1108
  %v1110 = vpop.f32.mrf.mxu0
  %1111 = vmatprep.mubr.bf16.mxu0 0
  %1112 = vmatmul.mubr.bf16.gmra.mxu0 %v990
  %v1113 = vpop.f32.mrf.mxu0
  %v1114 = vadd.f32 0.0, %v1113
  %v1115 = vpop.f32.mrf.mxu0
  %v1116 = vpop.f32.mrf.mxu0
  %v1117 = vadd.f32 0.0, %v1116
  %v1118 = vpop.f32.mrf.mxu0
  %1119 = vdwg.mxu0
  %1120 = vst [vmem:[%s9] sm:$0xff] %v1090
  %1121 = vst [vmem:[%s9 + $0x8] sm:$0xff] %v1093
  %1122 = vst [vmem:[%s9 + $0x10] sm:$0xff] %v1098
  %1123 = vst [vmem:[%s9 + $0x18] sm:$0xff] %v1101
  %1124 = vst [vmem:[%s9 + $0x20] sm:$0xff] %v1106
  %1125 = vst [vmem:[%s9 + $0x28] sm:$0xff] %v1109
  %1126 = vst [vmem:[%s9 + $0x30] sm:$0xff] %v1114
  %1127 = vst [vmem:[%s9 + $0x38] sm:$0xff] %v1117
  // Predicated region
  $region34: #{gat_forward.4} parent=0 // pred_check
    _
  $region35: #{gat_forward.4} parent=0 // pred_check_branch
    %1129 = sbr.rel (0) target = $region37
  $region36: #{gat_forward.4} parent=0 // pred_region
    _
  $region37: #{gat_forward.4} parent=0 // pred_fallthru
    _
  // Predicated region
  $region38: #{gat_forward.4} parent=0 // pred_check
    _
  $region39: #{gat_forward.4} parent=0 // pred_check_branch
    %1131 = sbr.rel (0) target = $region41
  $region40: #{gat_forward.4} parent=0 // pred_region
    _
  $region41: #{gat_forward.4} parent=0 // pred_fallthru
    _
  // Predicated region
  $region42: #{gat_forward.4} parent=0 // pred_check
    _
  $region43: #{gat_forward.4} parent=0 // pred_check_branch
    %1133 = sbr.rel (0) target = $region45
  $region44: #{gat_forward.4} parent=0 // pred_region
    _
  $region45: #{gat_forward.4} parent=0 // pred_fallthru
    _
  // Predicated region
  $region46: #{gat_forward.4} parent=0 // pred_check
    _
  $region47: #{gat_forward.4} parent=0 // pred_check_branch
    %1135 = sbr.rel (0) target = $region49
  $region48: #{gat_forward.4} parent=0 // pred_region
    _
  $region49: #{gat_forward.4} parent=0 // pred_fallthru
    _

// kernel: gat_forward.3
$region0: #{gat_forward.3}
  #allocation0 [shape = 'u32[]', space=smem, size = 0x4, offset = 0x4, fixed_abs, tag = 'smem constant byte address 0x4 - core index']
  #allocation1 [shape = 'u32[144,128]{1,0:T(1,128)}', space=vmem, size = 0x12000, scoped, tag = 'internal scratch']
  %s0 = inlined_call_operand.hbm [shape: f32[64,128], index: 0, kind: input, shape index: {}]
  %s1 = inlined_call_operand.hbm [shape: bf16[128,128], index: 1, kind: input, shape index: {}]
  %s2 = inlined_call_operand.vmem [shape: f32[1,128], index: 2, kind: input, shape index: {}]
  %s3 = inlined_call_operand.hbm [shape: bf16[128,128], index: 3, kind: input, shape index: {}]
  %s4 = inlined_call_operand.hbm [shape: bf16[128,128], index: 4, kind: input, shape index: {}]
  %s5 = inlined_call_operand.vmem [shape: f32[64,128], index: 5, kind: output, shape index: {0}]
  %s6 = inlined_call_operand.vmem [shape: f32[64,128], index: 6, kind: output, shape index: {1}]
  %7 = xla_tuple %s5, %s6
  %s8 = sld [smem:[#allocation0]]
  $region54: #{gat_forward.3} parent=0
    _
  %s10 = ssub.s32 1, %s8
  %s11 = scalar_select 0, %s10, %s8
  $region1: #{gat_forward.3} parent=0
    #allocation2 [shape = 'u8[32768]{0}', space=vmem, size = 0x8000, scoped, tag = 'input window, operand 0, single buffered']
    #allocation3 [shape = 's32[1]{0}', space=sflag, size = 0x4, scoped, tag = 'scoped memory for gat_forward.3']
    #allocation4 [shape = 'u8[32768]{0}', space=vmem, size = 0x8000, scoped, tag = 'input window, operand 1, single buffered']
    #allocation5 [shape = 's32[1]{0}', space=sflag, size = 0x4, scoped, tag = 'scoped memory for gat_forward.3']
    #allocation6 [shape = 'u8[32768]{0}', space=vmem, size = 0x8000, scoped, tag = 'input window, operand 3, single buffered']
    #allocation7 [shape = 'u8[32768]{0}', space=vmem, size = 0x8000, scoped, tag = 'input window, operand 4, single buffered']
    #allocation8 [shape = 's32[1]{0}', space=sflag, size = 0x4, scoped, tag = 'scoped memory for gat_forward.3']
    %12 = vsyncpa [#allocation3], 0
    %13 = vsyncpa [#allocation5], 0
    %14 = vsyncpa [#allocation8], 0
    // Predicated region
    $region2: #{gat_forward.3} parent=1 // pred_check
      _
    $region3: #{gat_forward.3} parent=1 // pred_check_branch
      %16 = sbr.rel (0) target = $region5
    $region4: #{gat_forward.3} parent=1 // pred_region
      %s18 = ssub.s32 1024, 1024
      %19 = vsyncadd [#allocation3], %s18
      %s20 = sshll.u32 [#allocation2], 4
      %s21 = int_to_ptr.vmem [resolvable:$true] %s20
      %26 = dma.hbm_to_vmem [thread:$0]  %s0, 1024, %s21, [#allocation3], 128, 128, 8
    $region5: #{gat_forward.3} parent=1 // pred_fallthru
      _
    // Predicated region
    $region6: #{gat_forward.3} parent=1 // pred_check
      _
    $region7: #{gat_forward.3} parent=1 // pred_check_branch
      %28 = sbr.rel (0) target = $region9
    $region8: #{gat_forward.3} parent=1 // pred_region
      %s30 = ssub.s32 1024, 1024
      %31 = vsyncadd [#allocation5], %s30
      %s32 = sshll.u32 [#allocation4], 4
      %s33 = int_to_ptr.vmem [resolvable:$true] %s32
      %38 = dma.hbm_to_vmem [thread:$0]  %s1, 1024, %s33, [#allocation5], 64, 64, 4
    $region9: #{gat_forward.3} parent=1 // pred_fallthru
      _
    // Predicated region
    $region10: #{gat_forward.3} parent=1 // pred_check
      _
    $region11: #{gat_forward.3} parent=1 // pred_check_branch
      %40 = sbr.rel (0) target = $region13
    $region12: #{gat_forward.3} parent=1 // pred_region
      _
    $region13: #{gat_forward.3} parent=1 // pred_fallthru
      _
    // Predicated region
    $region14: #{gat_forward.3} parent=1 // pred_check
      _
    $region15: #{gat_forward.3} parent=1 // pred_check_branch
      %42 = sbr.rel (0) target = $region17
    $region16: #{gat_forward.3} parent=1 // pred_region
      %s44 = ssub.s32 1024, 1024
      %45 = vsyncadd [#allocation5], %s44
      %s46 = sshll.u32 [#allocation6], 4
      %s47 = int_to_ptr.vmem [resolvable:$true] %s46
      %52 = dma.hbm_to_vmem [thread:$0]  %s3, 1024, %s47, [#allocation5], 64, 64, 4
    $region17: #{gat_forward.3} parent=1 // pred_fallthru
      _
    // Predicated region
    $region18: #{gat_forward.3} parent=1 // pred_check
      _
    $region19: #{gat_forward.3} parent=1 // pred_check_branch
      %54 = sbr.rel (0) target = $region21
    $region20: #{gat_forward.3} parent=1 // pred_region
      %s56 = ssub.s32 1024, 1024
      %57 = vsyncadd [#allocation8], %s56
      %s58 = sshll.u32 [#allocation7], 4
      %s59 = int_to_ptr.vmem [resolvable:$true] %s58
      %64 = dma.hbm_to_vmem [thread:$0]  %s4, 1024, %s59, [#allocation8], 64, 64, 4
    $region21: #{gat_forward.3} parent=1 // pred_fallthru
      _
    // Predicated region
    $region22: #{gat_forward.3} parent=1 // pred_check
      _
    $region23: #{gat_forward.3} parent=1 // pred_check_branch
      %66 = sbr.rel (0) target = $region25
    $region24: #{gat_forward.3} parent=1 // pred_region
      %67 = dma.done [#allocation3], 1024
    $region25: #{gat_forward.3} parent=1 // pred_fallthru
      _
    // Predicated region
    $region26: #{gat_forward.3} parent=1 // pred_check
      _
    $region27: #{gat_forward.3} parent=1 // pred_check_branch
      %69 = sbr.rel (0) target = $region29
    $region28: #{gat_forward.3} parent=1 // pred_region
      %70 = dma.done [#allocation5], 1024
    $region29: #{gat_forward.3} parent=1 // pred_fallthru
      _
    // Predicated region
    $region30: #{gat_forward.3} parent=1 // pred_check
      _
    $region31: #{gat_forward.3} parent=1 // pred_check_branch
      %72 = sbr.rel (0) target = $region33
    $region32: #{gat_forward.3} parent=1 // pred_region
      %73 = dma.done [#allocation5], 1024
    $region33: #{gat_forward.3} parent=1 // pred_fallthru
      _
    // Predicated region
    $region34: #{gat_forward.3} parent=1 // pred_check
      _
    $region35: #{gat_forward.3} parent=1 // pred_check_branch
      %75 = sbr.rel (0) target = $region37
    $region36: #{gat_forward.3} parent=1 // pred_region
      %76 = dma.done [#allocation8], 1024
    $region37: #{gat_forward.3} parent=1 // pred_fallthru
      _
    %v78 = vld [vmem:[#allocation2] sm:$0xff]
    %v79 = vld [vmem:[#allocation2 + $0x8] sm:$0xff]
    %v80 = vld [vmem:[#allocation2 + $0x10] sm:$0xff]
    %v81 = vld [vmem:[#allocation2 + $0x18] sm:$0xff]
    %v82 = vld [vmem:[#allocation2 + $0x20] sm:$0xff]
    %v83 = vld [vmem:[#allocation2 + $0x28] sm:$0xff]
    %v84 = vld [vmem:[#allocation2 + $0x30] sm:$0xff]
    %v85 = vld [vmem:[#allocation2 + $0x38] sm:$0xff]
    %v86 = vpack.c.bf16 %v79, %v78
    %v87 = vpack.c.bf16 %v81, %v80
    %v88 = vpack.c.bf16 %v83, %v82
    %v89 = vpack.c.bf16 %v85, %v84
    %v90 = vld [vmem:[#allocation4] sm:$0xf]
    %v91 = vld [vmem:[#allocation4 + $0x4] sm:$0xf]
    %v92 = vld [vmem:[#allocation4 + $0x8] sm:$0xf]
    %v93 = vld [vmem:[#allocation4 + $0xc] sm:$0xf]
    %v94 = vld [vmem:[#allocation4 + $0x10] sm:$0xf]
    %v95 = vld [vmem:[#allocation4 + $0x14] sm:$0xf]
    %v96 = vld [vmem:[#allocation4 + $0x18] sm:$0xf]
    %v97 = vld [vmem:[#allocation4 + $0x1c] sm:$0xf]
    %v98 = vld [vmem:[#allocation4 + $0x20] sm:$0xf]
    %v99 = vld [vmem:[#allocation4 + $0x24] sm:$0xf]
    %v100 = vld [vmem:[#allocation4 + $0x28] sm:$0xf]
    %v101 = vld [vmem:[#allocation4 + $0x2c] sm:$0xf]
    %v102 = vld [vmem:[#allocation4 + $0x30] sm:$0xf]
    %v103 = vld [vmem:[#allocation4 + $0x34] sm:$0xf]
    %v104 = vld [vmem:[#allocation4 + $0x38] sm:$0xf]
    %v105 = vld [vmem:[#allocation4 + $0x3c] sm:$0xf]
    %v106 = vld [vmem:[%s2] sm:$0x1]
    %v108 = vlaneseq
    %v109 = vshrl.u32 %v108, 7
    %v110 = vsub.s32 0, %v109
    %v111 = vrot.slane %v106, %v110
    %v129 = vunpack.c.l.b16 %v90
    %v130 = vunpack.c.l.b16 %v91
    %v131 = vunpack.c.l.b16 %v92
    %v132 = vunpack.c.l.b16 %v93
    %v133 = vunpack.c.l.b16 %v94
    %v134 = vunpack.c.l.b16 %v95
    %v135 = vunpack.c.l.b16 %v96
    %v136 = vunpack.c.l.b16 %v97
    %v137 = vunpack.c.l.b16 %v98
    %v138 = vunpack.c.l.b16 %v99
    %v139 = vunpack.c.l.b16 %v100
    %v140 = vunpack.c.l.b16 %v101
    %v141 = vunpack.c.l.b16 %v102
    %v142 = vunpack.c.l.b16 %v103
    %v143 = vunpack.c.l.b16 %v104
    %v144 = vunpack.c.l.b16 %v105
    %v145 = vpack.c.b16 %v130, %v129
    %v146 = vpack.c.b16 %v132, %v131
    %v147 = vpack.c.b16 %v134, %v133
    %v148 = vpack.c.b16 %v136, %v135
    %v149 = vpack.c.b16 %v138, %v137
    %v150 = vpack.c.b16 %v140, %v139
    %v151 = vpack.c.b16 %v142, %v141
    %v152 = vpack.c.b16 %v144, %v143
    %161 = vmatprep.subr.bf16.mxu0 0
    %162 = vmatpush1.bf16.msra.mxu0 %v152
    %163 = vmatprep.subr.bf16.mxu0 0
    %164 = vmatpush1.bf16.msra.mxu0 %v151
    %165 = vmatprep.subr.bf16.mxu0 0
    %166 = vmatpush1.bf16.msra.mxu0 %v150
    %167 = vmatprep.subr.bf16.mxu0 0
    %168 = vmatpush1.bf16.msra.mxu0 %v149
    %169 = vmatprep.subr.bf16.mxu0 0
    %170 = vmatpush1.bf16.msra.mxu0 %v148
    %171 = vmatprep.subr.bf16.mxu0 0
    %172 = vmatpush1.bf16.msra.mxu0 %v147
    %173 = vmatprep.subr.bf16.mxu0 0
    %174 = vmatpush1.bf16.msra.mxu0 %v146
    %175 = vmatprep.subr.bf16.mxu0 0
    %176 = vmatpush1.bf16.msra.mxu0 %v145
    %177 = vmatprep.subr.bf16.mxu0 0
    %178 = vmatpush2.bf16.msra.mxu0 0
    %179 = vmatprep.subr.bf16.mxu0 0
    %180 = vmatpush2.bf16.msra.mxu0 0
    %181 = vmatprep.subr.bf16.mxu0 0
    %182 = vmatpush2.bf16.msra.mxu0 0
    %183 = vmatprep.subr.bf16.mxu0 0
    %184 = vmatpush2.bf16.msra.mxu0 0
    %185 = vmatprep.subr.bf16.mxu0 0
    %186 = vmatpush2.bf16.msra.mxu0 0
    %187 = vmatprep.subr.bf16.mxu0 0
    %188 = vmatpush2.bf16.msra.mxu0 0
    %189 = vmatprep.subr.bf16.mxu0 0
    %190 = vmatpush2.bf16.msra.mxu0 0
    %191 = vmatprep.subr.bf16.mxu0 0
    %192 = vmatpush2.bf16.msra.mxu0 0
    %193 = vmatprep.mubr.bf16.mxu0 0
    %194 = vmatmul.mubr.bf16.gmra.mxu0 %v86
    %v195 = vpop.f32.mrf.mxu0
    %v196 = vadd.f32 %v111, %v195
    %v197 = vpop.f32.mrf.mxu0
    %v198 = vpop.f32.mrf.mxu0
    %v199 = vadd.f32 %v111, %v198
    %v200 = vpop.f32.mrf.mxu0
    %201 = vmatprep.mubr.bf16.mxu0 0
    %202 = vmatmul.mubr.bf16.gmra.mxu0 %v87
    %v203 = vpop.f32.mrf.mxu0
    %v204 = vadd.f32 %v111, %v203
    %v205 = vpop.f32.mrf.mxu0
    %v206 = vpop.f32.mrf.mxu0
    %v207 = vadd.f32 %v111, %v206
    %v208 = vpop.f32.mrf.mxu0
    %209 = vmatprep.mubr.bf16.mxu0 0
    %210 = vmatmul.mubr.bf16.gmra.mxu0 %v88
    %v211 = vpop.f32.mrf.mxu0
    %v212 = vadd.f32 %v111, %v211
    %v213 = vpop.f32.mrf.mxu0
    %v214 = vpop.f32.mrf.mxu0
    %v215 = vadd.f32 %v111, %v214
    %v216 = vpop.f32.mrf.mxu0
    %217 = vmatprep.mubr.bf16.mxu0 0
    %218 = vmatmul.mubr.bf16.gmra.mxu0 %v89
    %v219 = vpop.f32.mrf.mxu0
    %v220 = vadd.f32 %v111, %v219
    %v221 = vpop.f32.mrf.mxu0
    %v222 = vpop.f32.mrf.mxu0
    %v223 = vadd.f32 %v111, %v222
    %v224 = vpop.f32.mrf.mxu0
    %225 = vdwg.mxu0
    %vm226 = vcmp.gt.f32.partialorder %v196, 0.0
    %vm227 = vcmp.gt.f32.partialorder %v199, 0.0
    %vm228 = vcmp.gt.f32.partialorder %v204, 0.0
    %vm229 = vcmp.gt.f32.partialorder %v207, 0.0
    %vm230 = vcmp.gt.f32.partialorder %v212, 0.0
    %vm231 = vcmp.gt.f32.partialorder %v215, 0.0
    %vm232 = vcmp.gt.f32.partialorder %v220, 0.0
    %vm233 = vcmp.gt.f32.partialorder %v223, 0.0
    %v234 = vmul.f32 %v196, 0.01
    %v235 = vmul.f32 %v199, 0.01
    %v236 = vmul.f32 %v204, 0.01
    %v237 = vmul.f32 %v207, 0.01
    %v238 = vmul.f32 %v212, 0.01
    %v239 = vmul.f32 %v215, 0.01
    %v240 = vmul.f32 %v220, 0.01
    %v241 = vmul.f32 %v223, 0.01
    %v242 = vsel %vm226, %v196, %v234
    %v243 = vsel %vm227, %v199, %v235
    %v244 = vsel %vm228, %v204, %v236
    %v245 = vsel %vm229, %v207, %v237
    %v246 = vsel %vm230, %v212, %v238
    %v247 = vsel %vm231, %v215, %v239
    %v248 = vsel %vm232, %v220, %v240
    %v249 = vsel %vm233, %v223, %v241
    %v250 = vpack.c.bf16 %v243, %v242
    %v251 = vpack.c.bf16 %v245, %v244
    %v252 = vpack.c.bf16 %v247, %v246
    %v253 = vpack.c.bf16 %v249, %v248
    %v254 = vld [vmem:[#allocation6] sm:$0xf]
    %v255 = vld [vmem:[#allocation6 + $0x4] sm:$0xf]
    %v256 = vld [vmem:[#allocation6 + $0x8] sm:$0xf]
    %v257 = vld [vmem:[#allocation6 + $0xc] sm:$0xf]
    %v258 = vld [vmem:[#allocation6 + $0x10] sm:$0xf]
    %v259 = vld [vmem:[#allocation6 + $0x14] sm:$0xf]
    %v260 = vld [vmem:[#allocation6 + $0x18] sm:$0xf]
    %v261 = vld [vmem:[#allocation6 + $0x1c] sm:$0xf]
    %v262 = vld [vmem:[#allocation6 + $0x20] sm:$0xf]
    %v263 = vld [vmem:[#allocation6 + $0x24] sm:$0xf]
    %v264 = vld [vmem:[#allocation6 + $0x28] sm:$0xf]
    %v265 = vld [vmem:[#allocation6 + $0x2c] sm:$0xf]
    %v266 = vld [vmem:[#allocation6 + $0x30] sm:$0xf]
    %v267 = vld [vmem:[#allocation6 + $0x34] sm:$0xf]
    %v268 = vld [vmem:[#allocation6 + $0x38] sm:$0xf]
    %v269 = vld [vmem:[#allocation6 + $0x3c] sm:$0xf]
    %v286 = vunpack.c.l.b16 %v254
    %v287 = vunpack.c.l.b16 %v255
    %v288 = vunpack.c.l.b16 %v256
    %v289 = vunpack.c.l.b16 %v257
    %v290 = vunpack.c.l.b16 %v258
    %v291 = vunpack.c.l.b16 %v259
    %v292 = vunpack.c.l.b16 %v260
    %v293 = vunpack.c.l.b16 %v261
    %v294 = vunpack.c.l.b16 %v262
    %v295 = vunpack.c.l.b16 %v263
    %v296 = vunpack.c.l.b16 %v264
    %v297 = vunpack.c.l.b16 %v265
    %v298 = vunpack.c.l.b16 %v266
    %v299 = vunpack.c.l.b16 %v267
    %v300 = vunpack.c.l.b16 %v268
    %v301 = vunpack.c.l.b16 %v269
    %v302 = vpack.c.b16 %v287, %v286
    %v303 = vpack.c.b16 %v289, %v288
    %v304 = vpack.c.b16 %v291, %v290
    %v305 = vpack.c.b16 %v293, %v292
    %v306 = vpack.c.b16 %v295, %v294
    %v307 = vpack.c.b16 %v297, %v296
    %v308 = vpack.c.b16 %v299, %v298
    %v309 = vpack.c.b16 %v301, %v300
    %318 = vmatprep.subr.bf16.mxu0 0
    %319 = vmatpush1.bf16.msra.mxu0 %v309
    %320 = vmatprep.subr.bf16.mxu0 0
    %321 = vmatpush1.bf16.msra.mxu0 %v308
    %322 = vmatprep.subr.bf16.mxu0 0
    %323 = vmatpush1.bf16.msra.mxu0 %v307
    %324 = vmatprep.subr.bf16.mxu0 0
    %325 = vmatpush1.bf16.msra.mxu0 %v306
    %326 = vmatprep.subr.bf16.mxu0 0
    %327 = vmatpush1.bf16.msra.mxu0 %v305
    %328 = vmatprep.subr.bf16.mxu0 0
    %329 = vmatpush1.bf16.msra.mxu0 %v304
    %330 = vmatprep.subr.bf16.mxu0 0
    %331 = vmatpush1.bf16.msra.mxu0 %v303
    %332 = vmatprep.subr.bf16.mxu0 0
    %333 = vmatpush1.bf16.msra.mxu0 %v302
    %334 = vmatprep.subr.bf16.mxu0 0
    %335 = vmatpush2.bf16.msra.mxu0 0
    %336 = vmatprep.subr.bf16.mxu0 0
    %337 = vmatpush2.bf16.msra.mxu0 0
    %338 = vmatprep.subr.bf16.mxu0 0
    %339 = vmatpush2.bf16.msra.mxu0 0
    %340 = vmatprep.subr.bf16.mxu0 0
    %341 = vmatpush2.bf16.msra.mxu0 0
    %342 = vmatprep.subr.bf16.mxu0 0
    %343 = vmatpush2.bf16.msra.mxu0 0
    %344 = vmatprep.subr.bf16.mxu0 0
    %345 = vmatpush2.bf16.msra.mxu0 0
    %346 = vmatprep.subr.bf16.mxu0 0
    %347 = vmatpush2.bf16.msra.mxu0 0
    %348 = vmatprep.subr.bf16.mxu0 0
    %349 = vmatpush2.bf16.msra.mxu0 0
    %350 = vmatprep.mubr.bf16.mxu0 0
    %351 = vmatmul.mubr.bf16.gmra.mxu0 %v250
    %v352 = vpop.f32.mrf.mxu0
    %v353 = vadd.f32 0.0, %v352
    %v354 = vpop.f32.mrf.mxu0
    %v355 = vpop.f32.mrf.mxu0
    %v356 = vadd.f32 0.0, %v355
    %v357 = vpop.f32.mrf.mxu0
    %358 = vmatprep.mubr.bf16.mxu0 0
    %359 = vmatmul.mubr.bf16.gmra.mxu0 %v251
    %v360 = vpop.f32.mrf.mxu0
    %v361 = vadd.f32 0.0, %v360
    %v362 = vpop.f32.mrf.mxu0
    %v363 = vpop.f32.mrf.mxu0
    %v364 = vadd.f32 0.0, %v363
    %v365 = vpop.f32.mrf.mxu0
    %366 = vmatprep.mubr.bf16.mxu0 0
    %367 = vmatmul.mubr.bf16.gmra.mxu0 %v252
    %v368 = vpop.f32.mrf.mxu0
    %v369 = vadd.f32 0.0, %v368
    %v370 = vpop.f32.mrf.mxu0
    %v371 = vpop.f32.mrf.mxu0
    %v372 = vadd.f32 0.0, %v371
    %v373 = vpop.f32.mrf.mxu0
    %374 = vmatprep.mubr.bf16.mxu0 0
    %375 = vmatmul.mubr.bf16.gmra.mxu0 %v253
    %v376 = vpop.f32.mrf.mxu0
    %v377 = vadd.f32 0.0, %v376
    %v378 = vpop.f32.mrf.mxu0
    %v379 = vpop.f32.mrf.mxu0
    %v380 = vadd.f32 0.0, %v379
    %v381 = vpop.f32.mrf.mxu0
    %382 = vdwg.mxu0
    %383 = vst [vmem:[%s5] sm:$0xff] %v353
    %384 = vst [vmem:[%s5 + $0x8] sm:$0xff] %v356
    %385 = vst [vmem:[%s5 + $0x10] sm:$0xff] %v361
    %386 = vst [vmem:[%s5 + $0x18] sm:$0xff] %v364
    %387 = vst [vmem:[%s5 + $0x20] sm:$0xff] %v369
    %388 = vst [vmem:[%s5 + $0x28] sm:$0xff] %v372
    %389 = vst [vmem:[%s5 + $0x30] sm:$0xff] %v377
    %390 = vst [vmem:[%s5 + $0x38] sm:$0xff] %v380
    %v391 = vpack.c.bf16 %v356, %v353
    %v392 = vpack.c.bf16 %v364, %v361
    %v393 = vpack.c.bf16 %v372, %v369
    %v394 = vpack.c.bf16 %v380, %v377
    %v395 = vld [vmem:[#allocation7] sm:$0xf]
    %v396 = vld [vmem:[#allocation7 + $0x4] sm:$0xf]
    %v397 = vld [vmem:[#allocation7 + $0x8] sm:$0xf]
    %v398 = vld [vmem:[#allocation7 + $0xc] sm:$0xf]
    %v399 = vld [vmem:[#allocation7 + $0x10] sm:$0xf]
    %v400 = vld [vmem:[#allocation7 + $0x14] sm:$0xf]
    %v401 = vld [vmem:[#allocation7 + $0x18] sm:$0xf]
    %v402 = vld [vmem:[#allocation7 + $0x1c] sm:$0xf]
    %v403 = vld [vmem:[#allocation7 + $0x20] sm:$0xf]
    %v404 = vld [vmem:[#allocation7 + $0x24] sm:$0xf]
    %v405 = vld [vmem:[#allocation7 + $0x28] sm:$0xf]
    %v406 = vld [vmem:[#allocation7 + $0x2c] sm:$0xf]
    %v407 = vld [vmem:[#allocation7 + $0x30] sm:$0xf]
    %v408 = vld [vmem:[#allocation7 + $0x34] sm:$0xf]
    %v409 = vld [vmem:[#allocation7 + $0x38] sm:$0xf]
    %v410 = vld [vmem:[#allocation7 + $0x3c] sm:$0xf]
    %v427 = vunpack.c.l.b16 %v395
    %v428 = vunpack.c.l.b16 %v396
    %v429 = vunpack.c.l.b16 %v397
    %v430 = vunpack.c.l.b16 %v398
    %v431 = vunpack.c.l.b16 %v399
    %v432 = vunpack.c.l.b16 %v400
    %v433 = vunpack.c.l.b16 %v401
    %v434 = vunpack.c.l.b16 %v402
    %v435 = vunpack.c.l.b16 %v403
    %v436 = vunpack.c.l.b16 %v404
    %v437 = vunpack.c.l.b16 %v405
    %v438 = vunpack.c.l.b16 %v406
    %v439 = vunpack.c.l.b16 %v407
    %v440 = vunpack.c.l.b16 %v408
    %v441 = vunpack.c.l.b16 %v409
    %v442 = vunpack.c.l.b16 %v410
    %v443 = vpack.c.b16 %v428, %v427
    %v444 = vpack.c.b16 %v430, %v429
    %v445 = vpack.c.b16 %v432, %v431
    %v446 = vpack.c.b16 %v434, %v433
    %v447 = vpack.c.b16 %v436, %v435
    %v448 = vpack.c.b16 %v438, %v437
    %v449 = vpack.c.b16 %v440, %v439
    %v450 = vpack.c.b16 %v442, %v441
    %459 = vmatprep.subr.bf16.mxu0 0
    %460 = vmatpush1.bf16.msra.mxu0 %v450
    %461 = vmatprep.subr.bf16.mxu0 0
    %462 = vmatpush1.bf16.msra.mxu0 %v449
    %463 = vmatprep.subr.bf16.mxu0 0
    %464 = vmatpush1.bf16.msra.mxu0 %v448
    %465 = vmatprep.subr.bf16.mxu0 0
    %466 = vmatpush1.bf16.msra.mxu0 %v447
    %467 = vmatprep.subr.bf16.mxu0 0
    %468 = vmatpush1.bf16.msra.mxu0 %v446
    %469 = vmatprep.subr.bf16.mxu0 0
    %470 = vmatpush1.bf16.msra.mxu0 %v445
    %471 = vmatprep.subr.bf16.mxu0 0
    %472 = vmatpush1.bf16.msra.mxu0 %v444
    %473 = vmatprep.subr.bf16.mxu0 0
    %474 = vmatpush1.bf16.msra.mxu0 %v443
    %475 = vmatprep.subr.bf16.mxu0 0
    %476 = vmatpush2.bf16.msra.mxu0 0
    %477 = vmatprep.subr.bf16.mxu0 0
    %478 = vmatpush2.bf16.msra.mxu0 0
    %479 = vmatprep.subr.bf16.mxu0 0
    %480 = vmatpush2.bf16.msra.mxu0 0
    %481 = vmatprep.subr.bf16.mxu0 0
    %482 = vmatpush2.bf16.msra.mxu0 0
    %483 = vmatprep.subr.bf16.mxu0 0
    %484 = vmatpush2.bf16.msra.mxu0 0
    %485 = vmatprep.subr.bf16.mxu0 0
    %486 = vmatpush2.bf16.msra.mxu0 0
    %487 = vmatprep.subr.bf16.mxu0 0
    %488 = vmatpush2.bf16.msra.mxu0 0
    %489 = vmatprep.subr.bf16.mxu0 0
    %490 = vmatpush2.bf16.msra.mxu0 0
    %491 = vmatprep.mubr.bf16.mxu0 0
    %492 = vmatmul.mubr.bf16.gmra.mxu0 %v391
    %v493 = vpop.f32.mrf.mxu0
    %v494 = vadd.f32 0.0, %v493
    %v495 = vpop.f32.mrf.mxu0
    %v496 = vpop.f32.mrf.mxu0
    %v497 = vadd.f32 0.0, %v496
    %v498 = vpop.f32.mrf.mxu0
    %499 = vmatprep.mubr.bf16.mxu0 0
    %500 = vmatmul.mubr.bf16.gmra.mxu0 %v392
    %v501 = vpop.f32.mrf.mxu0
    %v502 = vadd.f32 0.0, %v501
    %v503 = vpop.f32.mrf.mxu0
    %v504 = vpop.f32.mrf.mxu0
    %v505 = vadd.f32 0.0, %v504
    %v506 = vpop.f32.mrf.mxu0
    %507 = vmatprep.mubr.bf16.mxu0 0
    %508 = vmatmul.mubr.bf16.gmra.mxu0 %v393
    %v509 = vpop.f32.mrf.mxu0
    %v510 = vadd.f32 0.0, %v509
    %v511 = vpop.f32.mrf.mxu0
    %v512 = vpop.f32.mrf.mxu0
    %v513 = vadd.f32 0.0, %v512
    %v514 = vpop.f32.mrf.mxu0
    %515 = vmatprep.mubr.bf16.mxu0 0
    %516 = vmatmul.mubr.bf16.gmra.mxu0 %v394
    %v517 = vpop.f32.mrf.mxu0
    %v518 = vadd.f32 0.0, %v517
    %v519 = vpop.f32.mrf.mxu0
    %v520 = vpop.f32.mrf.mxu0
    %v521 = vadd.f32 0.0, %v520
    %v522 = vpop.f32.mrf.mxu0
    %523 = vdwg.mxu0
    %524 = vst [vmem:[%s6] sm:$0xff] %v494
    %525 = vst [vmem:[%s6 + $0x8] sm:$0xff] %v497
    %526 = vst [vmem:[%s6 + $0x10] sm:$0xff] %v502
    %527 = vst [vmem:[%s6 + $0x18] sm:$0xff] %v505
    %528 = vst [vmem:[%s6 + $0x20] sm:$0xff] %v510
    %529 = vst [vmem:[%s6 + $0x28] sm:$0xff] %v513
    %530 = vst [vmem:[%s6 + $0x30] sm:$0xff] %v518
    %531 = vst [vmem:[%s6 + $0x38] sm:$0xff] %v521
    // Predicated region
    $region38: #{gat_forward.3} parent=1 // pred_check
      _
    $region39: #{gat_forward.3} parent=1 // pred_check_branch
      %533 = sbr.rel (0) target = $region41
    $region40: #{gat_forward.3} parent=1 // pred_region
      _
    $region41: #{gat_forward.3} parent=1 // pred_fallthru
      _
    // Predicated region
    $region42: #{gat_forward.3} parent=1 // pred_check
      _
    $region43: #{gat_forward.3} parent=1 // pred_check_branch
      %535 = sbr.rel (0) target = $region45
    $region44: #{gat_forward.3} parent=1 // pred_region
      _
    $region45: #{gat_forward.3} parent=1 // pred_fallthru
      _
    // Predicated region
    $region46: #{gat_forward.3} parent=1 // pred_check
      _
    $region47: #{gat_forward.3} parent=1 // pred_check_branch
      %537 = sbr.rel (0) target = $region49
    $region48: #{gat_forward.3} parent=1 // pred_region
      _
    $region49: #{gat_forward.3} parent=1 // pred_fallthru
      _
    // Predicated region
    $region50: #{gat_forward.3} parent=1 // pred_check
      _
    $region51: #{gat_forward.3} parent=1 // pred_check_branch
      %539 = sbr.rel (0) target = $region53
    $region52: #{gat_forward.3} parent=1 // pred_region
      _
    $region53: #{gat_forward.3} parent=1 // pred_fallthru
      _
    %540 = vsyncpa [#allocation3], 1
    %541 = vsyncpa [#allocation5], 1
    %542 = vsyncpa [#allocation8], 1

</llo_original>
